<compile_context>
chip_gen: v6e
topology: v6e:2x2x1
jax: 0.10.0
libtpu: 0.0.40
codegen_flags: <defaults>
</compile_context>

<pallas_src>
import jax
import jax.numpy as jnp
from jax.experimental import pallas as pl
from jax.experimental.pallas import tpu as pltpu

K_PAD = 896   # 784 padded up to 7*128
N_PAD = 128   # 10 output classes padded up to one full lane width


def _round_up(n, m):
    return (n + m - 1) // m * m


def _mlp_kernel(x_ref, w1_ref, b1_ref, w2_ref, b2_ref, w3_ref, b3_ref, o_ref):
    x = x_ref[...]                                         # (TB, 896) bf16

    # fc1 + relu (bf16 MXU, f32 accumulate)
    h1 = jnp.dot(x, w1_ref[...], preferred_element_type=jnp.float32)
    h1 = jnp.maximum(h1 + b1_ref[...].astype(jnp.float32), 0.0)
    h1 = h1.astype(jnp.bfloat16)

    # hiddenLayer + relu
    h2 = jnp.dot(h1, w2_ref[...], preferred_element_type=jnp.float32)
    h2 = jnp.maximum(h2 + b2_ref[...].astype(jnp.float32), 0.0)
    h2 = h2.astype(jnp.bfloat16)

    # fc2 -> 128-wide lane-dense logits; padded lanes get ~-1e9 from the bias
    logits = jnp.dot(h2, w3_ref[...], preferred_element_type=jnp.float32)
    logits = logits + b3_ref[...].astype(jnp.float32)

    # numerically stable log_softmax along dim=1 (padded lanes contribute 0)
    m = jnp.max(logits, axis=1, keepdims=True)
    z = logits - m
    lse = jnp.log(jnp.sum(jnp.exp(z), axis=1, keepdims=True))
    o_ref[...] = (z - lse).astype(o_ref.dtype)


def basic_fc_forward(x, params):
    """x: any shape with prod = N*784 (e.g. (N,1,28,28)). Returns (N,10) float16."""
    (w1, b1), (w2, b2), (w3, b3) = params  # already padded, bf16

    x2d = x.reshape(-1, 784).astype(jnp.bfloat16)   # view(-1, 784) + half-precision
    n = x2d.shape[0]

    # Batch tile: multiple of 8 (sublane), capped at 256 (full MXU feed on v6e,
    # comfortably inside the 32 MiB scoped-VMEM default on v7x).
    tb = 256 if n >= 256 else _round_up(n, 8)
    n_pad = _round_up(n, tb)

    # Zero-pad batch rows and the 784 -> 896 contraction dim (exact).
    x_padded = jnp.zeros((n_pad, K_PAD), jnp.bfloat16).at[:n, :784].set(x2d)

    grid = (n_pad // tb,)

    out_padded = pl.pallas_call(
        _mlp_kernel,
        out_shape=jax.ShapeDtypeStruct((n_pad, N_PAD), jnp.bfloat16),
        grid=grid,
        in_specs=[
            pl.BlockSpec((tb, K_PAD), lambda i: (i, 0)),    # x tile
            pl.BlockSpec((K_PAD, 512), lambda i: (0, 0)),   # w1 (resident)
            pl.BlockSpec((1, 512), lambda i: (0, 0)),       # b1
            pl.BlockSpec((512, 512), lambda i: (0, 0)),     # w2
            pl.BlockSpec((1, 512), lambda i: (0, 0)),       # b2
            pl.BlockSpec((512, N_PAD), lambda i: (0, 0)),   # w3 (lane-padded)
            pl.BlockSpec((1, N_PAD), lambda i: (0, 0)),     # b3 (-1e9 pad lanes)
        ],
        out_specs=pl.BlockSpec((tb, N_PAD), lambda i: (i, 0)),
        compiler_params=pltpu.CompilerParams(
            dimension_semantics=("parallel",)),
    )(x_padded, w1, b1, w2, b2, w3, b3)

    # Drop batch/lane padding, then cast the tiny (N,10) result to fp16 to
    # match the PyTorch module's half-precision output.
    return out_padded[:n, :10].astype(jnp.float16)


def init_params(key):
    """Deterministic init mirroring nn.Linear defaults, stored in bfloat16.

    PyTorch Linear weight is (out, in); we store the transpose (in, out) so the
    kernel does x @ W + b.  w1 is row-padded 784->896 with zeros, w3 is
    column-padded 10->128 with zeros, and b3's padded lanes are -1e9 so the
    log_softmax over the 128-wide slab is exact on the first 10 lanes.
    """
    def linear(key, fan_in, fan_out):
        kw, kb = jax.random.split(key)
        bound = 1.0 / jnp.sqrt(jnp.float32(fan_in))
        w = jax.random.uniform(kw, (fan_in, fan_out), jnp.float32, -bound, bound)
        b = jax.random.uniform(kb, (1, fan_out), jnp.float32, -bound, bound)
        return w.astype(jnp.bfloat16), b.astype(jnp.bfloat16)

    k1, k2, k3 = jax.random.split(key, 3)
    w1, b1 = linear(k1, 784, 512)   # fc1
    w2, b2 = linear(k2, 512, 512)   # hiddenLayer
    w3, b3 = linear(k3, 512, 10)    # fc2

    w1p = jnp.zeros((K_PAD, 512), jnp.bfloat16).at[:784, :].set(w1)
    w3p = jnp.zeros((512, N_PAD), jnp.bfloat16).at[:, :10].set(w3)
    b3p = jnp.full((1, N_PAD), -1e9, jnp.bfloat16).at[:, :10].set(b3)

    return ((w1p, b1), (w2, b2), (w3p, b3p))


if __name__ == "__main__":
    key = jax.random.PRNGKey(0)
    kp, kx = jax.random.split(key)

    params = init_params(kp)
    # Small MNIST-like input: batch=2, 1x28x28 -> flattened to (2, 784).
    x = jax.random.normal(kx, (2, 1, 28, 28), jnp.float32)

    out = basic_fc_forward(x, params)
    out = jax.block_until_ready(out)

    assert out.shape == (2, 10)
    assert out.dtype == jnp.float16
    # log-softmax rows should (approximately) exp-sum to 1
    row_sums = jnp.sum(jnp.exp(out.astype(jnp.float32)), axis=1)
    assert bool(jnp.all(jnp.abs(row_sums - 1.0) < 1e-2))

    print("KERNEL_OK")
</pallas_src>

<mosaic_0001>
module attributes {stable_mosaic.version = 11 : i64} {
  func.func @_mlp_kernel(%arg0: i32, %arg1: memref<8x896xbf16, #tpu.memory_space<vmem>>, %arg2: memref<896x512xbf16, #tpu.memory_space<vmem>>, %arg3: memref<1x512xbf16, #tpu.memory_space<vmem>>, %arg4: memref<512x512xbf16, #tpu.memory_space<vmem>>, %arg5: memref<1x512xbf16, #tpu.memory_space<vmem>>, %arg6: memref<512x128xbf16, #tpu.memory_space<vmem>>, %arg7: memref<1x128xbf16, #tpu.memory_space<vmem>>, %arg8: memref<8x128xbf16, #tpu.memory_space<vmem>>) attributes {dimension_semantics = [#tpu.dimension_semantics<parallel>], iteration_bounds = array<i64: 1>, scalar_prefetch = 0 : i64, scratch_operands = 0 : i64, tpu.core_type = #tpu.core_type<tc>, window_params = [{transform_indices = @transform_0, window_bounds = array<i64: 8, 896>}, {pipeline_mode = #tpu.pipeline_mode<synchronous>, transform_indices = @transform_1, window_bounds = array<i64: 896, 512>}, {pipeline_mode = #tpu.pipeline_mode<synchronous>, transform_indices = @transform_2, window_bounds = array<i64: 1, 512>}, {pipeline_mode = #tpu.pipeline_mode<synchronous>, transform_indices = @transform_3, window_bounds = array<i64: 512, 512>}, {pipeline_mode = #tpu.pipeline_mode<synchronous>, transform_indices = @transform_4, window_bounds = array<i64: 1, 512>}, {pipeline_mode = #tpu.pipeline_mode<synchronous>, transform_indices = @transform_5, window_bounds = array<i64: 512, 128>}, {pipeline_mode = #tpu.pipeline_mode<synchronous>, transform_indices = @transform_6, window_bounds = array<i64: 1, 128>}, {transform_indices = @transform_7, window_bounds = array<i64: 8, 128>}]} {
    %c0 = arith.constant 0 : index
    %c0_0 = arith.constant 0 : index
    %0 = vector.load %arg1[%c0, %c0_0] : memref<8x896xbf16, #tpu.memory_space<vmem>>, vector<8x896xbf16>
    %c0_1 = arith.constant 0 : index
    %c0_2 = arith.constant 0 : index
    %1 = vector.load %arg2[%c0_1, %c0_2] : memref<896x512xbf16, #tpu.memory_space<vmem>>, vector<896x512xbf16>
    %cst = arith.constant dense<0.000000e+00> : vector<8x512xf32>
    %2 = tpu.matmul %0, %1, %cst {dimension_numbers = #tpu.dot_dimension_numbers<[1], [0], [0], [1], [0, 0, 1, 1], [], []>} : vector<8x896xbf16>, vector<896x512xbf16>, vector<8x512xf32> -> vector<8x512xf32>
    %c0_3 = arith.constant 0 : index
    %c0_4 = arith.constant 0 : index
    %3 = vector.load %arg3[%c0_3, %c0_4] : memref<1x512xbf16, #tpu.memory_space<vmem>>, vector<1x512xbf16>
    %4 = arith.extf %3 : vector<1x512xbf16> to vector<1x512xf32>
    %5 = vector.broadcast %4 : vector<1x512xf32> to vector<8x512xf32>
    %6 = arith.addf %2, %5 : vector<8x512xf32>
    %cst_5 = arith.constant 0.000000e+00 : f32
    %7 = vector.broadcast %cst_5 : f32 to vector<8x512xf32>
    %8 = arith.maximumf %6, %7 : vector<8x512xf32>
    %9 = arith.truncf %8 : vector<8x512xf32> to vector<8x512xbf16>
    %c0_6 = arith.constant 0 : index
    %c0_7 = arith.constant 0 : index
    %10 = vector.load %arg4[%c0_6, %c0_7] : memref<512x512xbf16, #tpu.memory_space<vmem>>, vector<512x512xbf16>
    %cst_8 = arith.constant dense<0.000000e+00> : vector<8x512xf32>
    %11 = tpu.matmul %9, %10, %cst_8 {dimension_numbers = #tpu.dot_dimension_numbers<[1], [0], [0], [1], [0, 0, 1, 1], [], []>} : vector<8x512xbf16>, vector<512x512xbf16>, vector<8x512xf32> -> vector<8x512xf32>
    %c0_9 = arith.constant 0 : index
    %c0_10 = arith.constant 0 : index
    %12 = vector.load %arg5[%c0_9, %c0_10] : memref<1x512xbf16, #tpu.memory_space<vmem>>, vector<1x512xbf16>
    %13 = arith.extf %12 : vector<1x512xbf16> to vector<1x512xf32>
    %14 = vector.broadcast %13 : vector<1x512xf32> to vector<8x512xf32>
    %15 = arith.addf %11, %14 : vector<8x512xf32>
    %cst_11 = arith.constant 0.000000e+00 : f32
    %16 = vector.broadcast %cst_11 : f32 to vector<8x512xf32>
    %17 = arith.maximumf %15, %16 : vector<8x512xf32>
    %18 = arith.truncf %17 : vector<8x512xf32> to vector<8x512xbf16>
    %c0_12 = arith.constant 0 : index
    %c0_13 = arith.constant 0 : index
    %19 = vector.load %arg6[%c0_12, %c0_13] : memref<512x128xbf16, #tpu.memory_space<vmem>>, vector<512x128xbf16>
    %cst_14 = arith.constant dense<0.000000e+00> : vector<8x128xf32>
    %20 = tpu.matmul %18, %19, %cst_14 {dimension_numbers = #tpu.dot_dimension_numbers<[1], [0], [0], [1], [0, 0, 1, 1], [], []>} : vector<8x512xbf16>, vector<512x128xbf16>, vector<8x128xf32> -> vector<8x128xf32>
    %c0_15 = arith.constant 0 : index
    %c0_16 = arith.constant 0 : index
    %21 = vector.load %arg7[%c0_15, %c0_16] : memref<1x128xbf16, #tpu.memory_space<vmem>>, vector<1x128xbf16>
    %22 = arith.extf %21 : vector<1x128xbf16> to vector<1x128xf32>
    %23 = vector.broadcast %22 : vector<1x128xf32> to vector<8x128xf32>
    %24 = arith.addf %20, %23 : vector<8x128xf32>
    %cst_17 = arith.constant dense<0xFF800000> : vector<8xf32>
    %25 = vector.multi_reduction <maximumf>, %24, %cst_17 [1] : vector<8x128xf32> to vector<8xf32>
    %26 = vector.shape_cast %25 : vector<8xf32> to vector<8x1xf32>
    %27 = vector.broadcast %26 : vector<8x1xf32> to vector<8x128xf32>
    %28 = arith.subf %24, %27 : vector<8x128xf32>
    %29 = math.exp %28 : vector<8x128xf32>
    %cst_18 = arith.constant dense<0.000000e+00> : vector<8xf32>
    %30 = vector.multi_reduction <add>, %29, %cst_18 [1] : vector<8x128xf32> to vector<8xf32>
    %31 = vector.shape_cast %30 : vector<8xf32> to vector<8x1xf32>
    %32 = math.log %31 : vector<8x1xf32>
    %33 = vector.broadcast %32 : vector<8x1xf32> to vector<8x128xf32>
    %34 = arith.subf %28, %33 : vector<8x128xf32>
    %35 = arith.truncf %34 : vector<8x128xf32> to vector<8x128xbf16>
    %c0_19 = arith.constant 0 : index
    %c0_20 = arith.constant 0 : index
    %36 = vector.load %arg8[%c0_19, %c0_20] : memref<8x128xbf16, #tpu.memory_space<vmem>>, vector<8x128xbf16>
    tpu.vector_store %arg8[%c0_19, %c0_20], %35 {strides = array<i32>} : memref<8x128xbf16, #tpu.memory_space<vmem>>, vector<8x128xbf16>,
    return
  }
  func.func @transform_0(%arg0: i32) -> (i32, i32) {
    %c0_i32 = arith.constant 0 : i32
    %c0_i32_0 = arith.constant 0 : i32
    return %arg0, %c0_i32 : i32, i32
  }
  func.func @transform_1(%arg0: i32) -> (i32, i32) {
    %c0_i32 = arith.constant 0 : i32
    %c0_i32_0 = arith.constant 0 : i32
    %c0_i32_1 = arith.constant 0 : i32
    return %c0_i32, %c0_i32_0 : i32, i32
  }
  func.func @transform_2(%arg0: i32) -> (i32, i32) {
    %c0_i32 = arith.constant 0 : i32
    %c0_i32_0 = arith.constant 0 : i32
    %c0_i32_1 = arith.constant 0 : i32
    return %c0_i32, %c0_i32_0 : i32, i32
  }
  func.func @transform_3(%arg0: i32) -> (i32, i32) {
    %c0_i32 = arith.constant 0 : i32
    %c0_i32_0 = arith.constant 0 : i32
    %c0_i32_1 = arith.constant 0 : i32
    return %c0_i32, %c0_i32_0 : i32, i32
  }
  func.func @transform_4(%arg0: i32) -> (i32, i32) {
    %c0_i32 = arith.constant 0 : i32
    %c0_i32_0 = arith.constant 0 : i32
    %c0_i32_1 = arith.constant 0 : i32
    return %c0_i32, %c0_i32_0 : i32, i32
  }
  func.func @transform_5(%arg0: i32) -> (i32, i32) {
    %c0_i32 = arith.constant 0 : i32
    %c0_i32_0 = arith.constant 0 : i32
    %c0_i32_1 = arith.constant 0 : i32
    return %c0_i32, %c0_i32_0 : i32, i32
  }
  func.func @transform_6(%arg0: i32) -> (i32, i32) {
    %c0_i32 = arith.constant 0 : i32
    %c0_i32_0 = arith.constant 0 : i32
    %c0_i32_1 = arith.constant 0 : i32
    return %c0_i32, %c0_i32_0 : i32, i32
  }
  func.func @transform_7(%arg0: i32) -> (i32, i32) {
    %c0_i32 = arith.constant 0 : i32
    %c0_i32_0 = arith.constant 0 : i32
    return %arg0, %c0_i32 : i32, i32
  }
}

</mosaic_0001>

<llo_original>
// kernel: tpu_custom_call.1
$region0: #{tpu_custom_call.1}
  #allocation0 [shape = 'u32[]', space=smem, size = 0x4, offset = 0x4, fixed_abs, tag = 'smem constant byte address 0x4 - core index']
  #allocation1 [shape = 'u32[144,128]{1,0:T(1,128)}', space=vmem, size = 0x12000, scoped, tag = 'internal scratch']
  %s0 = inlined_call_operand.hbm [shape: bf16[8,896], index: 0, kind: input, shape index: {}]
  %s1 = inlined_call_operand.hbm [shape: bf16[896,512], index: 1, kind: input, shape index: {}]
  %s2 = inlined_call_operand.hbm [shape: bf16[1,512], index: 2, kind: input, shape index: {}]
  %s3 = inlined_call_operand.hbm [shape: bf16[512,512], index: 3, kind: input, shape index: {}]
  %s4 = inlined_call_operand.vmem [shape: bf16[1,512], index: 4, kind: input, shape index: {}]
  %s5 = inlined_call_operand.hbm [shape: bf16[512,128], index: 5, kind: input, shape index: {}]
  %s6 = inlined_call_operand.vmem [shape: bf16[1,128], index: 6, kind: input, shape index: {}]
  %s7 = inlined_call_operand.hbm [shape: bf16[8,128], index: 7, kind: output, shape index: {}]
  %s8 = sld [smem:[#allocation0]]
  $region58: #{tpu_custom_call.1} parent=0
    _
  %s10 = ssub.s32 1, %s8
  %s11 = scalar_select 0, %s10, %s8
  $region1: #{tpu_custom_call.1} parent=0
    #allocation2 [shape = 'u8[14336]{0}', space=vmem, size = 0x3800, scoped, tag = 'input window, operand 0, single buffered']
    #allocation3 [shape = 's32[1]{0}', space=sflag, size = 0x4, scoped, tag = 'scoped memory for tpu_custom_call.1']
    #allocation4 [shape = 's32[1]{0}', space=sflag, size = 0x4, scoped, tag = 'scoped memory for tpu_custom_call.1']
    #allocation5 [shape = 'u8[917504]{0}', space=vmem, size = 0xe0000, scoped, tag = 'input window, operand 1, single buffered']
    #allocation6 [shape = 's32[1]{0}', space=sflag, size = 0x4, scoped, tag = 'scoped memory for tpu_custom_call.1']
    #allocation7 [shape = 'u8[2048]{0}', space=vmem, size = 0x800, scoped, tag = 'input window, operand 2, single buffered']
    #allocation8 [shape = 'u8[524288]{0}', space=vmem, size = 0x80000, scoped, tag = 'input window, operand 3, single buffered']
    #allocation9 [shape = 's32[1]{0}', space=sflag, size = 0x4, scoped, tag = 'scoped memory for tpu_custom_call.1']
    #allocation10 [shape = 'u8[131072]{0}', space=vmem, size = 0x20000, scoped, tag = 'input window, operand 5, single buffered']
    #allocation11 [shape = 'u8[2048]{0}', space=vmem, size = 0x800, scoped, tag = 'output window, operand 0, single buffered']
    %12 = vsyncpa [#allocation3], 0
    %13 = vsyncpa [#allocation6], 0
    %14 = vsyncpa [#allocation9], 0
    %15 = vsyncpa [#allocation4], 0
    // Predicated region
    $region2: #{tpu_custom_call.1} parent=1 // pred_check
      _
    $region3: #{tpu_custom_call.1} parent=1 // pred_check_branch
      %17 = sbr.rel (0) target = $region5
    $region4: #{tpu_custom_call.1} parent=1 // pred_region
      %s19 = ssub.s32 448, 448
      %20 = vsyncadd [#allocation3], %s19
      %s22 = sshll.u32 [#allocation2], 4
      %s23 = int_to_ptr.vmem [resolvable:$true] %s22
      %25 = dma.hbm_to_vmem [thread:$0]  %s0, 448, %s23, [#allocation3]
    $region5: #{tpu_custom_call.1} parent=1 // pred_fallthru
      _
    // Predicated region
    $region6: #{tpu_custom_call.1} parent=1 // pred_check
      _
    $region7: #{tpu_custom_call.1} parent=1 // pred_check_branch
      %27 = sbr.rel (0) target = $region9
    $region8: #{tpu_custom_call.1} parent=1 // pred_region
      %s29 = ssub.s32 28672, 28672
      %30 = vsyncadd [#allocation6], %s29
      %s31 = sshll.u32 [#allocation5], 4
      %s32 = int_to_ptr.vmem [resolvable:$true] %s31
      %37 = dma.hbm_to_vmem [thread:$0]  %s1, 28672, %s32, [#allocation6], 256, 256, 16
    $region9: #{tpu_custom_call.1} parent=1 // pred_fallthru
      _
    // Predicated region
    $region10: #{tpu_custom_call.1} parent=1 // pred_check
      _
    $region11: #{tpu_custom_call.1} parent=1 // pred_check_branch
      %39 = sbr.rel (0) target = $region13
    $region12: #{tpu_custom_call.1} parent=1 // pred_region
      %s41 = ssub.s32 64, 64
      %42 = vsyncadd [#allocation6], %s41
      %s44 = sshll.u32 [#allocation7], 4
      %s45 = int_to_ptr.vmem [resolvable:$true] %s44
      %47 = dma.hbm_to_vmem [thread:$0]  %s2, 64, %s45, [#allocation6]
    $region13: #{tpu_custom_call.1} parent=1 // pred_fallthru
      _
    // Predicated region
    $region14: #{tpu_custom_call.1} parent=1 // pred_check
      _
    $region15: #{tpu_custom_call.1} parent=1 // pred_check_branch
      %49 = sbr.rel (0) target = $region17
    $region16: #{tpu_custom_call.1} parent=1 // pred_region
      %s51 = ssub.s32 16384, 16384
      %52 = vsyncadd [#allocation9], %s51
      %s53 = sshll.u32 [#allocation8], 4
      %s54 = int_to_ptr.vmem [resolvable:$true] %s53
      %59 = dma.hbm_to_vmem [thread:$0]  %s3, 16384, %s54, [#allocation9], 256, 256, 16
    $region17: #{tpu_custom_call.1} parent=1 // pred_fallthru
      _
    // Predicated region
    $region18: #{tpu_custom_call.1} parent=1 // pred_check
      _
    $region19: #{tpu_custom_call.1} parent=1 // pred_check_branch
      %61 = sbr.rel (0) target = $region21
    $region20: #{tpu_custom_call.1} parent=1 // pred_region
      _
    $region21: #{tpu_custom_call.1} parent=1 // pred_fallthru
      _
    // Predicated region
    $region22: #{tpu_custom_call.1} parent=1 // pred_check
      _
    $region23: #{tpu_custom_call.1} parent=1 // pred_check_branch
      %63 = sbr.rel (0) target = $region25
    $region24: #{tpu_custom_call.1} parent=1 // pred_region
      %s65 = ssub.s32 4096, 4096
      %66 = vsyncadd [#allocation9], %s65
      %s67 = sshll.u32 [#allocation10], 4
      %s68 = int_to_ptr.vmem [resolvable:$true] %s67
      %73 = dma.hbm_to_vmem [thread:$0]  %s5, 4096, %s68, [#allocation9], 64, 64, 4
    $region25: #{tpu_custom_call.1} parent=1 // pred_fallthru
      _
    // Predicated region
    $region26: #{tpu_custom_call.1} parent=1 // pred_check
      _
    $region27: #{tpu_custom_call.1} parent=1 // pred_check_branch
      %75 = sbr.rel (0) target = $region29
    $region28: #{tpu_custom_call.1} parent=1 // pred_region
      _
    $region29: #{tpu_custom_call.1} parent=1 // pred_fallthru
      _
    // Predicated region
    $region30: #{tpu_custom_call.1} parent=1 // pred_check
      _
    $region31: #{tpu_custom_call.1} parent=1 // pred_check_branch
      %77 = sbr.rel (0) target = $region33
    $region32: #{tpu_custom_call.1} parent=1 // pred_region
      %78 = dma.done [#allocation3], 448
    $region33: #{tpu_custom_call.1} parent=1 // pred_fallthru
      _
    // Predicated region
    $region34: #{tpu_custom_call.1} parent=1 // pred_check
      _
    $region35: #{tpu_custom_call.1} parent=1 // pred_check_branch
      %80 = sbr.rel (0) target = $region37
    $region36: #{tpu_custom_call.1} parent=1 // pred_region
      %81 = dma.done [#allocation6], 28672
    $region37: #{tpu_custom_call.1} parent=1 // pred_fallthru
      _
    // Predicated region
    $region38: #{tpu_custom_call.1} parent=1 // pred_check
      _
    $region39: #{tpu_custom_call.1} parent=1 // pred_check_branch
      %83 = sbr.rel (0) target = $region41
    $region40: #{tpu_custom_call.1} parent=1 // pred_region
      %84 = dma.done [#allocation6], 64
    $region41: #{tpu_custom_call.1} parent=1 // pred_fallthru
      _
    // Predicated region
    $region42: #{tpu_custom_call.1} parent=1 // pred_check
      _
    $region43: #{tpu_custom_call.1} parent=1 // pred_check_branch
      %86 = sbr.rel (0) target = $region45
    $region44: #{tpu_custom_call.1} parent=1 // pred_region
      %87 = dma.done [#allocation9], 16384
    $region45: #{tpu_custom_call.1} parent=1 // pred_fallthru
      _
    // Predicated region
    $region46: #{tpu_custom_call.1} parent=1 // pred_check
      _
    $region47: #{tpu_custom_call.1} parent=1 // pred_check_branch
      %89 = sbr.rel (0) target = $region49
    $region48: #{tpu_custom_call.1} parent=1 // pred_region
      %90 = dma.done [#allocation9], 4096
    $region49: #{tpu_custom_call.1} parent=1 // pred_fallthru
      _
    %v92 = vld [vmem:[#allocation2] sm:$0xff]
    %v93 = vld [vmem:[#allocation2 + $0x8] sm:$0xff]
    %v94 = vld [vmem:[#allocation2 + $0x10] sm:$0xff]
    %v95 = vld [vmem:[#allocation2 + $0x18] sm:$0xf]
    %v96 = vld [vmem:[#allocation5] sm:$0xff]
    %v97 = vld [vmem:[#allocation5 + $0x8] sm:$0xff]
    %v98 = vld [vmem:[#allocation5 + $0x10] sm:$0xff]
    %v99 = vld [vmem:[#allocation5 + $0x18] sm:$0xff]
    %v100 = vld [vmem:[#allocation5 + $0x20] sm:$0xff]
    %v101 = vld [vmem:[#allocation5 + $0x28] sm:$0xff]
    %v102 = vld [vmem:[#allocation5 + $0x30] sm:$0xff]
    %v103 = vld [vmem:[#allocation5 + $0x38] sm:$0xff]
    %v104 = vld [vmem:[#allocation5 + $0x40] sm:$0xff]
    %v105 = vld [vmem:[#allocation5 + $0x48] sm:$0xff]
    %v106 = vld [vmem:[#allocation5 + $0x50] sm:$0xff]
    %v107 = vld [vmem:[#allocation5 + $0x58] sm:$0xff]
    %v108 = vld [vmem:[#allocation5 + $0x60] sm:$0xff]
    %v109 = vld [vmem:[#allocation5 + $0x68] sm:$0xff]
    %v110 = vld [vmem:[#allocation5 + $0x70] sm:$0xff]
    %v111 = vld [vmem:[#allocation5 + $0x78] sm:$0xff]
    %v112 = vld [vmem:[#allocation5 + $0x80] sm:$0xff]
    %v113 = vld [vmem:[#allocation5 + $0x88] sm:$0xff]
    %v114 = vld [vmem:[#allocation5 + $0x90] sm:$0xff]
    %v115 = vld [vmem:[#allocation5 + $0x98] sm:$0xff]
    %v116 = vld [vmem:[#allocation5 + $0xa0] sm:$0xff]
    %v117 = vld [vmem:[#allocation5 + $0xa8] sm:$0xff]
    %v118 = vld [vmem:[#allocation5 + $0xb0] sm:$0xff]
    %v119 = vld [vmem:[#allocation5 + $0xb8] sm:$0xff]
    %v120 = vld [vmem:[#allocation5 + $0xc0] sm:$0xff]
    %v121 = vld [vmem:[#allocation5 + $0xc8] sm:$0xff]
    %v122 = vld [vmem:[#allocation5 + $0xd0] sm:$0xff]
    %v123 = vld [vmem:[#allocation5 + $0xd8] sm:$0xff]
    %v124 = vld [vmem:[#allocation5 + $0xe0] sm:$0xff]
    %v125 = vld [vmem:[#allocation5 + $0xe8] sm:$0xff]
    %v126 = vld [vmem:[#allocation5 + $0xf0] sm:$0xff]
    %v127 = vld [vmem:[#allocation5 + $0xf8] sm:$0xff]
    %v128 = vld [vmem:[#allocation5 + $0x100] sm:$0xff]
    %v129 = vld [vmem:[#allocation5 + $0x108] sm:$0xff]
    %v130 = vld [vmem:[#allocation5 + $0x110] sm:$0xff]
    %v131 = vld [vmem:[#allocation5 + $0x118] sm:$0xff]
    %v132 = vld [vmem:[#allocation5 + $0x120] sm:$0xff]
    %v133 = vld [vmem:[#allocation5 + $0x128] sm:$0xff]
    %v134 = vld [vmem:[#allocation5 + $0x130] sm:$0xff]
    %v135 = vld [vmem:[#allocation5 + $0x138] sm:$0xff]
    %v136 = vld [vmem:[#allocation5 + $0x140] sm:$0xff]
    %v137 = vld [vmem:[#allocation5 + $0x148] sm:$0xff]
    %v138 = vld [vmem:[#allocation5 + $0x150] sm:$0xff]
    %v139 = vld [vmem:[#allocation5 + $0x158] sm:$0xff]
    %v140 = vld [vmem:[#allocation5 + $0x160] sm:$0xff]
    %v141 = vld [vmem:[#allocation5 + $0x168] sm:$0xff]
    %v142 = vld [vmem:[#allocation5 + $0x170] sm:$0xff]
    %v143 = vld [vmem:[#allocation5 + $0x178] sm:$0xff]
    %v144 = vld [vmem:[#allocation5 + $0x180] sm:$0xff]
    %v145 = vld [vmem:[#allocation5 + $0x188] sm:$0xff]
    %v146 = vld [vmem:[#allocation5 + $0x190] sm:$0xff]
    %v147 = vld [vmem:[#allocation5 + $0x198] sm:$0xff]
    %v148 = vld [vmem:[#allocation5 + $0x1a0] sm:$0xff]
    %v149 = vld [vmem:[#allocation5 + $0x1a8] sm:$0xff]
    %v150 = vld [vmem:[#allocation5 + $0x1b0] sm:$0xff]
    %v151 = vld [vmem:[#allocation5 + $0x1b8] sm:$0xff]
    %v152 = vld [vmem:[#allocation5 + $0x1c0] sm:$0xff]
    %v153 = vld [vmem:[#allocation5 + $0x1c8] sm:$0xff]
    %v154 = vld [vmem:[#allocation5 + $0x1d0] sm:$0xff]
    %v155 = vld [vmem:[#allocation5 + $0x1d8] sm:$0xff]
    %v156 = vld [vmem:[#allocation5 + $0x1e0] sm:$0xff]
    %v157 = vld [vmem:[#allocation5 + $0x1e8] sm:$0xff]
    %v158 = vld [vmem:[#allocation5 + $0x1f0] sm:$0xff]
    %v159 = vld [vmem:[#allocation5 + $0x1f8] sm:$0xff]
    %v160 = vld [vmem:[#allocation5 + $0x200] sm:$0xff]
    %v161 = vld [vmem:[#allocation5 + $0x208] sm:$0xff]
    %v162 = vld [vmem:[#allocation5 + $0x210] sm:$0xff]
    %v163 = vld [vmem:[#allocation5 + $0x218] sm:$0xff]
    %v164 = vld [vmem:[#allocation5 + $0x220] sm:$0xff]
    %v165 = vld [vmem:[#allocation5 + $0x228] sm:$0xff]
    %v166 = vld [vmem:[#allocation5 + $0x230] sm:$0xff]
    %v167 = vld [vmem:[#allocation5 + $0x238] sm:$0xff]
    %v168 = vld [vmem:[#allocation5 + $0x240] sm:$0xff]
    %v169 = vld [vmem:[#allocation5 + $0x248] sm:$0xff]
    %v170 = vld [vmem:[#allocation5 + $0x250] sm:$0xff]
    %v171 = vld [vmem:[#allocation5 + $0x258] sm:$0xff]
    %v172 = vld [vmem:[#allocation5 + $0x260] sm:$0xff]
    %v173 = vld [vmem:[#allocation5 + $0x268] sm:$0xff]
    %v174 = vld [vmem:[#allocation5 + $0x270] sm:$0xff]
    %v175 = vld [vmem:[#allocation5 + $0x278] sm:$0xff]
    %v176 = vld [vmem:[#allocation5 + $0x280] sm:$0xff]
    %v177 = vld [vmem:[#allocation5 + $0x288] sm:$0xff]
    %v178 = vld [vmem:[#allocation5 + $0x290] sm:$0xff]
    %v179 = vld [vmem:[#allocation5 + $0x298] sm:$0xff]
    %v180 = vld [vmem:[#allocation5 + $0x2a0] sm:$0xff]
    %v181 = vld [vmem:[#allocation5 + $0x2a8] sm:$0xff]
    %v182 = vld [vmem:[#allocation5 + $0x2b0] sm:$0xff]
    %v183 = vld [vmem:[#allocation5 + $0x2b8] sm:$0xff]
    %v184 = vld [vmem:[#allocation5 + $0x2c0] sm:$0xff]
    %v185 = vld [vmem:[#allocation5 + $0x2c8] sm:$0xff]
    %v186 = vld [vmem:[#allocation5 + $0x2d0] sm:$0xff]
    %v187 = vld [vmem:[#allocation5 + $0x2d8] sm:$0xff]
    %v188 = vld [vmem:[#allocation5 + $0x2e0] sm:$0xff]
    %v189 = vld [vmem:[#allocation5 + $0x2e8] sm:$0xff]
    %v190 = vld [vmem:[#allocation5 + $0x2f0] sm:$0xff]
    %v191 = vld [vmem:[#allocation5 + $0x2f8] sm:$0xff]
    %v192 = vld [vmem:[#allocation5 + $0x300] sm:$0xff]
    %v193 = vld [vmem:[#allocation5 + $0x308] sm:$0xff]
    %v194 = vld [vmem:[#allocation5 + $0x310] sm:$0xff]
    %v195 = vld [vmem:[#allocation5 + $0x318] sm:$0xff]
    %v196 = vld [vmem:[#allocation5 + $0x320] sm:$0xff]
    %v197 = vld [vmem:[#allocation5 + $0x328] sm:$0xff]
    %v198 = vld [vmem:[#allocation5 + $0x330] sm:$0xff]
    %v199 = vld [vmem:[#allocation5 + $0x338] sm:$0xff]
    %v200 = vld [vmem:[#allocation5 + $0x340] sm:$0xff]
    %v201 = vld [vmem:[#allocation5 + $0x348] sm:$0xff]
    %v202 = vld [vmem:[#allocation5 + $0x350] sm:$0xff]
    %v203 = vld [vmem:[#allocation5 + $0x358] sm:$0xff]
    %v204 = vld [vmem:[#allocation5 + $0x360] sm:$0xff]
    %v205 = vld [vmem:[#allocation5 + $0x368] sm:$0xff]
    %v206 = vld [vmem:[#allocation5 + $0x370] sm:$0xff]
    %v207 = vld [vmem:[#allocation5 + $0x378] sm:$0xff]
    %v208 = vld [vmem:[#allocation5 + $0x380] sm:$0xff]
    %v209 = vld [vmem:[#allocation5 + $0x388] sm:$0xff]
    %v210 = vld [vmem:[#allocation5 + $0x390] sm:$0xff]
    %v211 = vld [vmem:[#allocation5 + $0x398] sm:$0xff]
    %v212 = vld [vmem:[#allocation5 + $0x3a0] sm:$0xff]
    %v213 = vld [vmem:[#allocation5 + $0x3a8] sm:$0xff]
    %v214 = vld [vmem:[#allocation5 + $0x3b0] sm:$0xff]
    %v215 = vld [vmem:[#allocation5 + $0x3b8] sm:$0xff]
    %v216 = vld [vmem:[#allocation5 + $0x3c0] sm:$0xff]
    %v217 = vld [vmem:[#allocation5 + $0x3c8] sm:$0xff]
    %v218 = vld [vmem:[#allocation5 + $0x3d0] sm:$0xff]
    %v219 = vld [vmem:[#allocation5 + $0x3d8] sm:$0xff]
    %v220 = vld [vmem:[#allocation5 + $0x3e0] sm:$0xff]
    %v221 = vld [vmem:[#allocation5 + $0x3e8] sm:$0xff]
    %v222 = vld [vmem:[#allocation5 + $0x3f0] sm:$0xff]
    %v223 = vld [vmem:[#allocation5 + $0x3f8] sm:$0xff]
    %v224 = vld [vmem:[#allocation5 + $0x400] sm:$0xff]
    %v225 = vld [vmem:[#allocation5 + $0x408] sm:$0xff]
    %v226 = vld [vmem:[#allocation5 + $0x410] sm:$0xff]
    %v227 = vld [vmem:[#allocation5 + $0x418] sm:$0xff]
    %v228 = vld [vmem:[#allocation5 + $0x420] sm:$0xff]
    %v229 = vld [vmem:[#allocation5 + $0x428] sm:$0xff]
    %v230 = vld [vmem:[#allocation5 + $0x430] sm:$0xff]
    %v231 = vld [vmem:[#allocation5 + $0x438] sm:$0xff]
    %v232 = vld [vmem:[#allocation5 + $0x440] sm:$0xff]
    %v233 = vld [vmem:[#allocation5 + $0x448] sm:$0xff]
    %v234 = vld [vmem:[#allocation5 + $0x450] sm:$0xff]
    %v235 = vld [vmem:[#allocation5 + $0x458] sm:$0xff]
    %v236 = vld [vmem:[#allocation5 + $0x460] sm:$0xff]
    %v237 = vld [vmem:[#allocation5 + $0x468] sm:$0xff]
    %v238 = vld [vmem:[#allocation5 + $0x470] sm:$0xff]
    %v239 = vld [vmem:[#allocation5 + $0x478] sm:$0xff]
    %v240 = vld [vmem:[#allocation5 + $0x480] sm:$0xff]
    %v241 = vld [vmem:[#allocation5 + $0x488] sm:$0xff]
    %v242 = vld [vmem:[#allocation5 + $0x490] sm:$0xff]
    %v243 = vld [vmem:[#allocation5 + $0x498] sm:$0xff]
    %v244 = vld [vmem:[#allocation5 + $0x4a0] sm:$0xff]
    %v245 = vld [vmem:[#allocation5 + $0x4a8] sm:$0xff]
    %v246 = vld [vmem:[#allocation5 + $0x4b0] sm:$0xff]
    %v247 = vld [vmem:[#allocation5 + $0x4b8] sm:$0xff]
    %v248 = vld [vmem:[#allocation5 + $0x4c0] sm:$0xff]
    %v249 = vld [vmem:[#allocation5 + $0x4c8] sm:$0xff]
    %v250 = vld [vmem:[#allocation5 + $0x4d0] sm:$0xff]
    %v251 = vld [vmem:[#allocation5 + $0x4d8] sm:$0xff]
    %v252 = vld [vmem:[#allocation5 + $0x4e0] sm:$0xff]
    %v253 = vld [vmem:[#allocation5 + $0x4e8] sm:$0xff]
    %v254 = vld [vmem:[#allocation5 + $0x4f0] sm:$0xff]
    %v255 = vld [vmem:[#allocation5 + $0x4f8] sm:$0xff]
    %v256 = vld [vmem:[#allocation5 + $0x500] sm:$0xff]
    %v257 = vld [vmem:[#allocation5 + $0x508] sm:$0xff]
    %v258 = vld [vmem:[#allocation5 + $0x510] sm:$0xff]
    %v259 = vld [vmem:[#allocation5 + $0x518] sm:$0xff]
    %v260 = vld [vmem:[#allocation5 + $0x520] sm:$0xff]
    %v261 = vld [vmem:[#allocation5 + $0x528] sm:$0xff]
    %v262 = vld [vmem:[#allocation5 + $0x530] sm:$0xff]
    %v263 = vld [vmem:[#allocation5 + $0x538] sm:$0xff]
    %v264 = vld [vmem:[#allocation5 + $0x540] sm:$0xff]
    %v265 = vld [vmem:[#allocation5 + $0x548] sm:$0xff]
    %v266 = vld [vmem:[#allocation5 + $0x550] sm:$0xff]
    %v267 = vld [vmem:[#allocation5 + $0x558] sm:$0xff]
    %v268 = vld [vmem:[#allocation5 + $0x560] sm:$0xff]
    %v269 = vld [vmem:[#allocation5 + $0x568] sm:$0xff]
    %v270 = vld [vmem:[#allocation5 + $0x570] sm:$0xff]
    %v271 = vld [vmem:[#allocation5 + $0x578] sm:$0xff]
    %v272 = vld [vmem:[#allocation5 + $0x580] sm:$0xff]
    %v273 = vld [vmem:[#allocation5 + $0x588] sm:$0xff]
    %v274 = vld [vmem:[#allocation5 + $0x590] sm:$0xff]
    %v275 = vld [vmem:[#allocation5 + $0x598] sm:$0xff]
    %v276 = vld [vmem:[#allocation5 + $0x5a0] sm:$0xff]
    %v277 = vld [vmem:[#allocation5 + $0x5a8] sm:$0xff]
    %v278 = vld [vmem:[#allocation5 + $0x5b0] sm:$0xff]
    %v279 = vld [vmem:[#allocation5 + $0x5b8] sm:$0xff]
    %v280 = vld [vmem:[#allocation5 + $0x5c0] sm:$0xff]
    %v281 = vld [vmem:[#allocation5 + $0x5c8] sm:$0xff]
    %v282 = vld [vmem:[#allocation5 + $0x5d0] sm:$0xff]
    %v283 = vld [vmem:[#allocation5 + $0x5d8] sm:$0xff]
    %v284 = vld [vmem:[#allocation5 + $0x5e0] sm:$0xff]
    %v285 = vld [vmem:[#allocation5 + $0x5e8] sm:$0xff]
    %v286 = vld [vmem:[#allocation5 + $0x5f0] sm:$0xff]
    %v287 = vld [vmem:[#allocation5 + $0x5f8] sm:$0xff]
    %v288 = vld [vmem:[#allocation5 + $0x600] sm:$0xff]
    %v289 = vld [vmem:[#allocation5 + $0x608] sm:$0xff]
    %v290 = vld [vmem:[#allocation5 + $0x610] sm:$0xff]
    %v291 = vld [vmem:[#allocation5 + $0x618] sm:$0xff]
    %v292 = vld [vmem:[#allocation5 + $0x620] sm:$0xff]
    %v293 = vld [vmem:[#allocation5 + $0x628] sm:$0xff]
    %v294 = vld [vmem:[#allocation5 + $0x630] sm:$0xff]
    %v295 = vld [vmem:[#allocation5 + $0x638] sm:$0xff]
    %v296 = vld [vmem:[#allocation5 + $0x640] sm:$0xff]
    %v297 = vld [vmem:[#allocation5 + $0x648] sm:$0xff]
    %v298 = vld [vmem:[#allocation5 + $0x650] sm:$0xff]
    %v299 = vld [vmem:[#allocation5 + $0x658] sm:$0xff]
    %v300 = vld [vmem:[#allocation5 + $0x660] sm:$0xff]
    %v301 = vld [vmem:[#allocation5 + $0x668] sm:$0xff]
    %v302 = vld [vmem:[#allocation5 + $0x670] sm:$0xff]
    %v303 = vld [vmem:[#allocation5 + $0x678] sm:$0xff]
    %v304 = vld [vmem:[#allocation5 + $0x680] sm:$0xff]
    %v305 = vld [vmem:[#allocation5 + $0x688] sm:$0xff]
    %v306 = vld [vmem:[#allocation5 + $0x690] sm:$0xff]
    %v307 = vld [vmem:[#allocation5 + $0x698] sm:$0xff]
    %v308 = vld [vmem:[#allocation5 + $0x6a0] sm:$0xff]
    %v309 = vld [vmem:[#allocation5 + $0x6a8] sm:$0xff]
    %v310 = vld [vmem:[#allocation5 + $0x6b0] sm:$0xff]
    %v311 = vld [vmem:[#allocation5 + $0x6b8] sm:$0xff]
    %v312 = vld [vmem:[#allocation5 + $0x6c0] sm:$0xff]
    %v313 = vld [vmem:[#allocation5 + $0x6c8] sm:$0xff]
    %v314 = vld [vmem:[#allocation5 + $0x6d0] sm:$0xff]
    %v315 = vld [vmem:[#allocation5 + $0x6d8] sm:$0xff]
    %v316 = vld [vmem:[#allocation5 + $0x6e0] sm:$0xff]
    %v317 = vld [vmem:[#allocation5 + $0x6e8] sm:$0xff]
    %v318 = vld [vmem:[#allocation5 + $0x6f0] sm:$0xff]
    %v319 = vld [vmem:[#allocation5 + $0x6f8] sm:$0xff]
    %v320 = vld [vmem:[#allocation7] sm:$0xf]
    %v321 = vunpack.c.l.bf16 %v320
    %v323 = vlaneseq
    %v324 = vshrl.u32 %v323, 7
    %v325 = vsub.s32 0, %v324
    %v326 = vrot.slane %v321, %v325
    %v327 = vlaneseq
    %v328 = vshrl.u32 %v327, 7
    %v329 = vsub.s32 2, %v328
    %v330 = vrot.slane %v321, %v329
    %v331 = vlaneseq
    %v332 = vshrl.u32 %v331, 7
    %v333 = vsub.s32 4, %v332
    %v334 = vrot.slane %v321, %v333
    %v335 = vlaneseq
    %v336 = vshrl.u32 %v335, 7
    %v337 = vsub.s32 6, %v336
    %v338 = vrot.slane %v321, %v337
    %v343 = vlaneseq
    %v344 = vshrl.u32 %v343, 7
    %v345 = vsub.s32 0, %v344
    %v346 = vrot.slane %v326, %v345
    %v347 = vlaneseq
    %v348 = vshrl.u32 %v347, 7
    %v349 = vsub.s32 0, %v348
    %v350 = vrot.slane %v330, %v349
    %v351 = vlaneseq
    %v352 = vshrl.u32 %v351, 7
    %v353 = vsub.s32 0, %v352
    %v354 = vrot.slane %v334, %v353
    %v355 = vlaneseq
    %v356 = vshrl.u32 %v355, 7
    %v357 = vsub.s32 0, %v356
    %v358 = vrot.slane %v338, %v357
    %v363 = vunpack.c.l.b16 %v92
    %v364 = vunpack.c.h.b16 %v92
    %v365 = vunpack.c.l.b16 %v93
    %v366 = vunpack.c.h.b16 %v93
    %v367 = vunpack.c.l.b16 %v94
    %v368 = vunpack.c.h.b16 %v94
    %v369 = vunpack.c.l.b16 %v95
    %v370 = vpack.c.b16 %v363, %v363
    %v371 = vpack.c.b16 %v364, %v364
    %v372 = vpack.c.b16 %v365, %v365
    %v373 = vpack.c.b16 %v366, %v366
    %v374 = vpack.c.b16 %v367, %v367
    %v375 = vpack.c.b16 %v368, %v368
    %v376 = vpack.c.b16 %v369, %v369
    %v608 = vunpack.c.l.b16 %v96
    %v609 = vunpack.c.h.b16 %v96
    %v610 = vunpack.c.l.b16 %v97
    %v611 = vunpack.c.h.b16 %v97
    %v612 = vunpack.c.l.b16 %v98
    %v613 = vunpack.c.h.b16 %v98
    %v614 = vunpack.c.l.b16 %v99
    %v615 = vunpack.c.h.b16 %v99
    %v616 = vunpack.c.l.b16 %v100
    %v617 = vunpack.c.h.b16 %v100
    %v618 = vunpack.c.l.b16 %v101
    %v619 = vunpack.c.h.b16 %v101
    %v620 = vunpack.c.l.b16 %v102
    %v621 = vunpack.c.h.b16 %v102
    %v622 = vunpack.c.l.b16 %v103
    %v623 = vunpack.c.h.b16 %v103
    %v624 = vunpack.c.l.b16 %v104
    %v625 = vunpack.c.h.b16 %v104
    %v626 = vunpack.c.l.b16 %v105
    %v627 = vunpack.c.h.b16 %v105
    %v628 = vunpack.c.l.b16 %v106
    %v629 = vunpack.c.h.b16 %v106
    %v630 = vunpack.c.l.b16 %v107
    %v631 = vunpack.c.h.b16 %v107
    %v632 = vunpack.c.l.b16 %v108
    %v633 = vunpack.c.h.b16 %v108
    %v634 = vunpack.c.l.b16 %v109
    %v635 = vunpack.c.h.b16 %v109
    %v636 = vunpack.c.l.b16 %v110
    %v637 = vunpack.c.h.b16 %v110
    %v638 = vunpack.c.l.b16 %v111
    %v639 = vunpack.c.h.b16 %v111
    %v640 = vunpack.c.l.b16 %v112
    %v641 = vunpack.c.h.b16 %v112
    %v642 = vunpack.c.l.b16 %v113
    %v643 = vunpack.c.h.b16 %v113
    %v644 = vunpack.c.l.b16 %v114
    %v645 = vunpack.c.h.b16 %v114
    %v646 = vunpack.c.l.b16 %v115
    %v647 = vunpack.c.h.b16 %v115
    %v648 = vunpack.c.l.b16 %v116
    %v649 = vunpack.c.h.b16 %v116
    %v650 = vunpack.c.l.b16 %v117
    %v651 = vunpack.c.h.b16 %v117
    %v652 = vunpack.c.l.b16 %v118
    %v653 = vunpack.c.h.b16 %v118
    %v654 = vunpack.c.l.b16 %v119
    %v655 = vunpack.c.h.b16 %v119
    %v656 = vunpack.c.l.b16 %v120
    %v657 = vunpack.c.h.b16 %v120
    %v658 = vunpack.c.l.b16 %v121
    %v659 = vunpack.c.h.b16 %v121
    %v660 = vunpack.c.l.b16 %v122
    %v661 = vunpack.c.h.b16 %v122
    %v662 = vunpack.c.l.b16 %v123
    %v663 = vunpack.c.h.b16 %v123
    %v664 = vunpack.c.l.b16 %v124
    %v665 = vunpack.c.h.b16 %v124
    %v666 = vunpack.c.l.b16 %v125
    %v667 = vunpack.c.h.b16 %v125
    %v668 = vunpack.c.l.b16 %v126
    %v669 = vunpack.c.h.b16 %v126
    %v670 = vunpack.c.l.b16 %v127
    %v671 = vunpack.c.h.b16 %v127
    %v672 = vunpack.c.l.b16 %v128
    %v673 = vunpack.c.h.b16 %v128
    %v674 = vunpack.c.l.b16 %v129
    %v675 = vunpack.c.h.b16 %v129
    %v676 = vunpack.c.l.b16 %v130
    %v677 = vunpack.c.h.b16 %v130
    %v678 = vunpack.c.l.b16 %v131
    %v679 = vunpack.c.h.b16 %v131
    %v680 = vunpack.c.l.b16 %v132
    %v681 = vunpack.c.h.b16 %v132
    %v682 = vunpack.c.l.b16 %v133
    %v683 = vunpack.c.h.b16 %v133
    %v684 = vunpack.c.l.b16 %v134
    %v685 = vunpack.c.h.b16 %v134
    %v686 = vunpack.c.l.b16 %v135
    %v687 = vunpack.c.h.b16 %v135
    %v688 = vunpack.c.l.b16 %v136
    %v689 = vunpack.c.h.b16 %v136
    %v690 = vunpack.c.l.b16 %v137
    %v691 = vunpack.c.h.b16 %v137
    %v692 = vunpack.c.l.b16 %v138
    %v693 = vunpack.c.h.b16 %v138
    %v694 = vunpack.c.l.b16 %v139
    %v695 = vunpack.c.h.b16 %v139
    %v696 = vunpack.c.l.b16 %v140
    %v697 = vunpack.c.h.b16 %v140
    %v698 = vunpack.c.l.b16 %v141
    %v699 = vunpack.c.h.b16 %v141
    %v700 = vunpack.c.l.b16 %v142
    %v701 = vunpack.c.h.b16 %v142
    %v702 = vunpack.c.l.b16 %v143
    %v703 = vunpack.c.h.b16 %v143
    %v704 = vunpack.c.l.b16 %v144
    %v705 = vunpack.c.h.b16 %v144
    %v706 = vunpack.c.l.b16 %v145
    %v707 = vunpack.c.h.b16 %v145
    %v708 = vunpack.c.l.b16 %v146
    %v709 = vunpack.c.h.b16 %v146
    %v710 = vunpack.c.l.b16 %v147
    %v711 = vunpack.c.h.b16 %v147
    %v712 = vunpack.c.l.b16 %v148
    %v713 = vunpack.c.h.b16 %v148
    %v714 = vunpack.c.l.b16 %v149
    %v715 = vunpack.c.h.b16 %v149
    %v716 = vunpack.c.l.b16 %v150
    %v717 = vunpack.c.h.b16 %v150
    %v718 = vunpack.c.l.b16 %v151
    %v719 = vunpack.c.h.b16 %v151
    %v720 = vunpack.c.l.b16 %v152
    %v721 = vunpack.c.h.b16 %v152
    %v722 = vunpack.c.l.b16 %v153
    %v723 = vunpack.c.h.b16 %v153
    %v724 = vunpack.c.l.b16 %v154
    %v725 = vunpack.c.h.b16 %v154
    %v726 = vunpack.c.l.b16 %v155
    %v727 = vunpack.c.h.b16 %v155
    %v728 = vunpack.c.l.b16 %v156
    %v729 = vunpack.c.h.b16 %v156
    %v730 = vunpack.c.l.b16 %v157
    %v731 = vunpack.c.h.b16 %v157
    %v732 = vunpack.c.l.b16 %v158
    %v733 = vunpack.c.h.b16 %v158
    %v734 = vunpack.c.l.b16 %v159
    %v735 = vunpack.c.h.b16 %v159
    %v736 = vunpack.c.l.b16 %v160
    %v737 = vunpack.c.h.b16 %v160
    %v738 = vunpack.c.l.b16 %v161
    %v739 = vunpack.c.h.b16 %v161
    %v740 = vunpack.c.l.b16 %v162
    %v741 = vunpack.c.h.b16 %v162
    %v742 = vunpack.c.l.b16 %v163
    %v743 = vunpack.c.h.b16 %v163
    %v744 = vunpack.c.l.b16 %v164
    %v745 = vunpack.c.h.b16 %v164
    %v746 = vunpack.c.l.b16 %v165
    %v747 = vunpack.c.h.b16 %v165
    %v748 = vunpack.c.l.b16 %v166
    %v749 = vunpack.c.h.b16 %v166
    %v750 = vunpack.c.l.b16 %v167
    %v751 = vunpack.c.h.b16 %v167
    %v752 = vunpack.c.l.b16 %v168
    %v753 = vunpack.c.h.b16 %v168
    %v754 = vunpack.c.l.b16 %v169
    %v755 = vunpack.c.h.b16 %v169
    %v756 = vunpack.c.l.b16 %v170
    %v757 = vunpack.c.h.b16 %v170
    %v758 = vunpack.c.l.b16 %v171
    %v759 = vunpack.c.h.b16 %v171
    %v760 = vunpack.c.l.b16 %v172
    %v761 = vunpack.c.h.b16 %v172
    %v762 = vunpack.c.l.b16 %v173
    %v763 = vunpack.c.h.b16 %v173
    %v764 = vunpack.c.l.b16 %v174
    %v765 = vunpack.c.h.b16 %v174
    %v766 = vunpack.c.l.b16 %v175
    %v767 = vunpack.c.h.b16 %v175
    %v768 = vunpack.c.l.b16 %v176
    %v769 = vunpack.c.h.b16 %v176
    %v770 = vunpack.c.l.b16 %v177
    %v771 = vunpack.c.h.b16 %v177
    %v772 = vunpack.c.l.b16 %v178
    %v773 = vunpack.c.h.b16 %v178
    %v774 = vunpack.c.l.b16 %v179
    %v775 = vunpack.c.h.b16 %v179
    %v776 = vunpack.c.l.b16 %v180
    %v777 = vunpack.c.h.b16 %v180
    %v778 = vunpack.c.l.b16 %v181
    %v779 = vunpack.c.h.b16 %v181
    %v780 = vunpack.c.l.b16 %v182
    %v781 = vunpack.c.h.b16 %v182
    %v782 = vunpack.c.l.b16 %v183
    %v783 = vunpack.c.h.b16 %v183
    %v784 = vunpack.c.l.b16 %v184
    %v785 = vunpack.c.h.b16 %v184
    %v786 = vunpack.c.l.b16 %v185
    %v787 = vunpack.c.h.b16 %v185
    %v788 = vunpack.c.l.b16 %v186
    %v789 = vunpack.c.h.b16 %v186
    %v790 = vunpack.c.l.b16 %v187
    %v791 = vunpack.c.h.b16 %v187
    %v792 = vunpack.c.l.b16 %v188
    %v793 = vunpack.c.h.b16 %v188
    %v794 = vunpack.c.l.b16 %v189
    %v795 = vunpack.c.h.b16 %v189
    %v796 = vunpack.c.l.b16 %v190
    %v797 = vunpack.c.h.b16 %v190
    %v798 = vunpack.c.l.b16 %v191
    %v799 = vunpack.c.h.b16 %v191
    %v800 = vunpack.c.l.b16 %v192
    %v801 = vunpack.c.h.b16 %v192
    %v802 = vunpack.c.l.b16 %v193
    %v803 = vunpack.c.h.b16 %v193
    %v804 = vunpack.c.l.b16 %v194
    %v805 = vunpack.c.h.b16 %v194
    %v806 = vunpack.c.l.b16 %v195
    %v807 = vunpack.c.h.b16 %v195
    %v808 = vunpack.c.l.b16 %v196
    %v809 = vunpack.c.h.b16 %v196
    %v810 = vunpack.c.l.b16 %v197
    %v811 = vunpack.c.h.b16 %v197
    %v812 = vunpack.c.l.b16 %v198
    %v813 = vunpack.c.h.b16 %v198
    %v814 = vunpack.c.l.b16 %v199
    %v815 = vunpack.c.h.b16 %v199
    %v816 = vunpack.c.l.b16 %v200
    %v817 = vunpack.c.h.b16 %v200
    %v818 = vunpack.c.l.b16 %v201
    %v819 = vunpack.c.h.b16 %v201
    %v820 = vunpack.c.l.b16 %v202
    %v821 = vunpack.c.h.b16 %v202
    %v822 = vunpack.c.l.b16 %v203
    %v823 = vunpack.c.h.b16 %v203
    %v824 = vunpack.c.l.b16 %v204
    %v825 = vunpack.c.h.b16 %v204
    %v826 = vunpack.c.l.b16 %v205
    %v827 = vunpack.c.h.b16 %v205
    %v828 = vunpack.c.l.b16 %v206
    %v829 = vunpack.c.h.b16 %v206
    %v830 = vunpack.c.l.b16 %v207
    %v831 = vunpack.c.h.b16 %v207
    %v832 = vunpack.c.l.b16 %v208
    %v833 = vunpack.c.h.b16 %v208
    %v834 = vunpack.c.l.b16 %v209
    %v835 = vunpack.c.h.b16 %v209
    %v836 = vunpack.c.l.b16 %v210
    %v837 = vunpack.c.h.b16 %v210
    %v838 = vunpack.c.l.b16 %v211
    %v839 = vunpack.c.h.b16 %v211
    %v840 = vunpack.c.l.b16 %v212
    %v841 = vunpack.c.h.b16 %v212
    %v842 = vunpack.c.l.b16 %v213
    %v843 = vunpack.c.h.b16 %v213
    %v844 = vunpack.c.l.b16 %v214
    %v845 = vunpack.c.h.b16 %v214
    %v846 = vunpack.c.l.b16 %v215
    %v847 = vunpack.c.h.b16 %v215
    %v848 = vunpack.c.l.b16 %v216
    %v849 = vunpack.c.h.b16 %v216
    %v850 = vunpack.c.l.b16 %v217
    %v851 = vunpack.c.h.b16 %v217
    %v852 = vunpack.c.l.b16 %v218
    %v853 = vunpack.c.h.b16 %v218
    %v854 = vunpack.c.l.b16 %v219
    %v855 = vunpack.c.h.b16 %v219
    %v856 = vunpack.c.l.b16 %v220
    %v857 = vunpack.c.h.b16 %v220
    %v858 = vunpack.c.l.b16 %v221
    %v859 = vunpack.c.h.b16 %v221
    %v860 = vunpack.c.l.b16 %v222
    %v861 = vunpack.c.h.b16 %v222
    %v862 = vunpack.c.l.b16 %v223
    %v863 = vunpack.c.h.b16 %v223
    %v864 = vunpack.c.l.b16 %v224
    %v865 = vunpack.c.h.b16 %v224
    %v866 = vunpack.c.l.b16 %v225
    %v867 = vunpack.c.h.b16 %v225
    %v868 = vunpack.c.l.b16 %v226
    %v869 = vunpack.c.h.b16 %v226
    %v870 = vunpack.c.l.b16 %v227
    %v871 = vunpack.c.h.b16 %v227
    %v872 = vunpack.c.l.b16 %v228
    %v873 = vunpack.c.h.b16 %v228
    %v874 = vunpack.c.l.b16 %v229
    %v875 = vunpack.c.h.b16 %v229
    %v876 = vunpack.c.l.b16 %v230
    %v877 = vunpack.c.h.b16 %v230
    %v878 = vunpack.c.l.b16 %v231
    %v879 = vunpack.c.h.b16 %v231
    %v880 = vunpack.c.l.b16 %v232
    %v881 = vunpack.c.h.b16 %v232
    %v882 = vunpack.c.l.b16 %v233
    %v883 = vunpack.c.h.b16 %v233
    %v884 = vunpack.c.l.b16 %v234
    %v885 = vunpack.c.h.b16 %v234
    %v886 = vunpack.c.l.b16 %v235
    %v887 = vunpack.c.h.b16 %v235
    %v888 = vunpack.c.l.b16 %v236
    %v889 = vunpack.c.h.b16 %v236
    %v890 = vunpack.c.l.b16 %v237
    %v891 = vunpack.c.h.b16 %v237
    %v892 = vunpack.c.l.b16 %v238
    %v893 = vunpack.c.h.b16 %v238
    %v894 = vunpack.c.l.b16 %v239
    %v895 = vunpack.c.h.b16 %v239
    %v896 = vunpack.c.l.b16 %v240
    %v897 = vunpack.c.h.b16 %v240
    %v898 = vunpack.c.l.b16 %v241
    %v899 = vunpack.c.h.b16 %v241
    %v900 = vunpack.c.l.b16 %v242
    %v901 = vunpack.c.h.b16 %v242
    %v902 = vunpack.c.l.b16 %v243
    %v903 = vunpack.c.h.b16 %v243
    %v904 = vunpack.c.l.b16 %v244
    %v905 = vunpack.c.h.b16 %v244
    %v906 = vunpack.c.l.b16 %v245
    %v907 = vunpack.c.h.b16 %v245
    %v908 = vunpack.c.l.b16 %v246
    %v909 = vunpack.c.h.b16 %v246
    %v910 = vunpack.c.l.b16 %v247
    %v911 = vunpack.c.h.b16 %v247
    %v912 = vunpack.c.l.b16 %v248
    %v913 = vunpack.c.h.b16 %v248
    %v914 = vunpack.c.l.b16 %v249
    %v915 = vunpack.c.h.b16 %v249
    %v916 = vunpack.c.l.b16 %v250
    %v917 = vunpack.c.h.b16 %v250
    %v918 = vunpack.c.l.b16 %v251
    %v919 = vunpack.c.h.b16 %v251
    %v920 = vunpack.c.l.b16 %v252
    %v921 = vunpack.c.h.b16 %v252
    %v922 = vunpack.c.l.b16 %v253
    %v923 = vunpack.c.h.b16 %v253
    %v924 = vunpack.c.l.b16 %v254
    %v925 = vunpack.c.h.b16 %v254
    %v926 = vunpack.c.l.b16 %v255
    %v927 = vunpack.c.h.b16 %v255
    %v928 = vunpack.c.l.b16 %v256
    %v929 = vunpack.c.h.b16 %v256
    %v930 = vunpack.c.l.b16 %v257
    %v931 = vunpack.c.h.b16 %v257
    %v932 = vunpack.c.l.b16 %v258
    %v933 = vunpack.c.h.b16 %v258
    %v934 = vunpack.c.l.b16 %v259
    %v935 = vunpack.c.h.b16 %v259
    %v936 = vunpack.c.l.b16 %v260
    %v937 = vunpack.c.h.b16 %v260
    %v938 = vunpack.c.l.b16 %v261
    %v939 = vunpack.c.h.b16 %v261
    %v940 = vunpack.c.l.b16 %v262
    %v941 = vunpack.c.h.b16 %v262
    %v942 = vunpack.c.l.b16 %v263
    %v943 = vunpack.c.h.b16 %v263
    %v944 = vunpack.c.l.b16 %v264
    %v945 = vunpack.c.h.b16 %v264
    %v946 = vunpack.c.l.b16 %v265
    %v947 = vunpack.c.h.b16 %v265
    %v948 = vunpack.c.l.b16 %v266
    %v949 = vunpack.c.h.b16 %v266
    %v950 = vunpack.c.l.b16 %v267
    %v951 = vunpack.c.h.b16 %v267
    %v952 = vunpack.c.l.b16 %v268
    %v953 = vunpack.c.h.b16 %v268
    %v954 = vunpack.c.l.b16 %v269
    %v955 = vunpack.c.h.b16 %v269
    %v956 = vunpack.c.l.b16 %v270
    %v957 = vunpack.c.h.b16 %v270
    %v958 = vunpack.c.l.b16 %v271
    %v959 = vunpack.c.h.b16 %v271
    %v960 = vunpack.c.l.b16 %v272
    %v961 = vunpack.c.h.b16 %v272
    %v962 = vunpack.c.l.b16 %v273
    %v963 = vunpack.c.h.b16 %v273
    %v964 = vunpack.c.l.b16 %v274
    %v965 = vunpack.c.h.b16 %v274
    %v966 = vunpack.c.l.b16 %v275
    %v967 = vunpack.c.h.b16 %v275
    %v968 = vunpack.c.l.b16 %v276
    %v969 = vunpack.c.h.b16 %v276
    %v970 = vunpack.c.l.b16 %v277
    %v971 = vunpack.c.h.b16 %v277
    %v972 = vunpack.c.l.b16 %v278
    %v973 = vunpack.c.h.b16 %v278
    %v974 = vunpack.c.l.b16 %v279
    %v975 = vunpack.c.h.b16 %v279
    %v976 = vunpack.c.l.b16 %v280
    %v977 = vunpack.c.h.b16 %v280
    %v978 = vunpack.c.l.b16 %v281
    %v979 = vunpack.c.h.b16 %v281
    %v980 = vunpack.c.l.b16 %v282
    %v981 = vunpack.c.h.b16 %v282
    %v982 = vunpack.c.l.b16 %v283
    %v983 = vunpack.c.h.b16 %v283
    %v984 = vunpack.c.l.b16 %v284
    %v985 = vunpack.c.h.b16 %v284
    %v986 = vunpack.c.l.b16 %v285
    %v987 = vunpack.c.h.b16 %v285
    %v988 = vunpack.c.l.b16 %v286
    %v989 = vunpack.c.h.b16 %v286
    %v990 = vunpack.c.l.b16 %v287
    %v991 = vunpack.c.h.b16 %v287
    %v992 = vunpack.c.l.b16 %v288
    %v993 = vunpack.c.h.b16 %v288
    %v994 = vunpack.c.l.b16 %v289
    %v995 = vunpack.c.h.b16 %v289
    %v996 = vunpack.c.l.b16 %v290
    %v997 = vunpack.c.h.b16 %v290
    %v998 = vunpack.c.l.b16 %v291
    %v999 = vunpack.c.h.b16 %v291
    %v1000 = vunpack.c.l.b16 %v292
    %v1001 = vunpack.c.h.b16 %v292
    %v1002 = vunpack.c.l.b16 %v293
    %v1003 = vunpack.c.h.b16 %v293
    %v1004 = vunpack.c.l.b16 %v294
    %v1005 = vunpack.c.h.b16 %v294
    %v1006 = vunpack.c.l.b16 %v295
    %v1007 = vunpack.c.h.b16 %v295
    %v1008 = vunpack.c.l.b16 %v296
    %v1009 = vunpack.c.h.b16 %v296
    %v1010 = vunpack.c.l.b16 %v297
    %v1011 = vunpack.c.h.b16 %v297
    %v1012 = vunpack.c.l.b16 %v298
    %v1013 = vunpack.c.h.b16 %v298
    %v1014 = vunpack.c.l.b16 %v299
    %v1015 = vunpack.c.h.b16 %v299
    %v1016 = vunpack.c.l.b16 %v300
    %v1017 = vunpack.c.h.b16 %v300
    %v1018 = vunpack.c.l.b16 %v301
    %v1019 = vunpack.c.h.b16 %v301
    %v1020 = vunpack.c.l.b16 %v302
    %v1021 = vunpack.c.h.b16 %v302
    %v1022 = vunpack.c.l.b16 %v303
    %v1023 = vunpack.c.h.b16 %v303
    %v1024 = vunpack.c.l.b16 %v304
    %v1025 = vunpack.c.h.b16 %v304
    %v1026 = vunpack.c.l.b16 %v305
    %v1027 = vunpack.c.h.b16 %v305
    %v1028 = vunpack.c.l.b16 %v306
    %v1029 = vunpack.c.h.b16 %v306
    %v1030 = vunpack.c.l.b16 %v307
    %v1031 = vunpack.c.h.b16 %v307
    %v1032 = vunpack.c.l.b16 %v308
    %v1033 = vunpack.c.h.b16 %v308
    %v1034 = vunpack.c.l.b16 %v309
    %v1035 = vunpack.c.h.b16 %v309
    %v1036 = vunpack.c.l.b16 %v310
    %v1037 = vunpack.c.h.b16 %v310
    %v1038 = vunpack.c.l.b16 %v311
    %v1039 = vunpack.c.h.b16 %v311
    %v1040 = vunpack.c.l.b16 %v312
    %v1041 = vunpack.c.h.b16 %v312
    %v1042 = vunpack.c.l.b16 %v313
    %v1043 = vunpack.c.h.b16 %v313
    %v1044 = vunpack.c.l.b16 %v314
    %v1045 = vunpack.c.h.b16 %v314
    %v1046 = vunpack.c.l.b16 %v315
    %v1047 = vunpack.c.h.b16 %v315
    %v1048 = vunpack.c.l.b16 %v316
    %v1049 = vunpack.c.h.b16 %v316
    %v1050 = vunpack.c.l.b16 %v317
    %v1051 = vunpack.c.h.b16 %v317
    %v1052 = vunpack.c.l.b16 %v318
    %v1053 = vunpack.c.h.b16 %v318
    %v1054 = vunpack.c.l.b16 %v319
    %v1055 = vunpack.c.h.b16 %v319
    %v1056 = vpack.c.b16 %v612, %v608
    %v1057 = vpack.c.b16 %v613, %v609
    %v1058 = vpack.c.b16 %v614, %v610
    %v1059 = vpack.c.b16 %v615, %v611
    %v1060 = vpack.c.b16 %v620, %v616
    %v1061 = vpack.c.b16 %v621, %v617
    %v1062 = vpack.c.b16 %v622, %v618
    %v1063 = vpack.c.b16 %v623, %v619
    %v1064 = vpack.c.b16 %v628, %v624
    %v1065 = vpack.c.b16 %v629, %v625
    %v1066 = vpack.c.b16 %v630, %v626
    %v1067 = vpack.c.b16 %v631, %v627
    %v1068 = vpack.c.b16 %v636, %v632
    %v1069 = vpack.c.b16 %v637, %v633
    %v1070 = vpack.c.b16 %v638, %v634
    %v1071 = vpack.c.b16 %v639, %v635
    %v1072 = vpack.c.b16 %v644, %v640
    %v1073 = vpack.c.b16 %v645, %v641
    %v1074 = vpack.c.b16 %v646, %v642
    %v1075 = vpack.c.b16 %v647, %v643
    %v1076 = vpack.c.b16 %v652, %v648
    %v1077 = vpack.c.b16 %v653, %v649
    %v1078 = vpack.c.b16 %v654, %v650
    %v1079 = vpack.c.b16 %v655, %v651
    %v1080 = vpack.c.b16 %v660, %v656
    %v1081 = vpack.c.b16 %v661, %v657
    %v1082 = vpack.c.b16 %v662, %v658
    %v1083 = vpack.c.b16 %v663, %v659
    %v1084 = vpack.c.b16 %v668, %v664
    %v1085 = vpack.c.b16 %v669, %v665
    %v1086 = vpack.c.b16 %v670, %v666
    %v1087 = vpack.c.b16 %v671, %v667
    %v1088 = vpack.c.b16 %v676, %v672
    %v1089 = vpack.c.b16 %v677, %v673
    %v1090 = vpack.c.b16 %v678, %v674
    %v1091 = vpack.c.b16 %v679, %v675
    %v1092 = vpack.c.b16 %v684, %v680
    %v1093 = vpack.c.b16 %v685, %v681
    %v1094 = vpack.c.b16 %v686, %v682
    %v1095 = vpack.c.b16 %v687, %v683
    %v1096 = vpack.c.b16 %v692, %v688
    %v1097 = vpack.c.b16 %v693, %v689
    %v1098 = vpack.c.b16 %v694, %v690
    %v1099 = vpack.c.b16 %v695, %v691
    %v1100 = vpack.c.b16 %v700, %v696
    %v1101 = vpack.c.b16 %v701, %v697
    %v1102 = vpack.c.b16 %v702, %v698
    %v1103 = vpack.c.b16 %v703, %v699
    %v1104 = vpack.c.b16 %v708, %v704
    %v1105 = vpack.c.b16 %v709, %v705
    %v1106 = vpack.c.b16 %v710, %v706
    %v1107 = vpack.c.b16 %v711, %v707
    %v1108 = vpack.c.b16 %v716, %v712
    %v1109 = vpack.c.b16 %v717, %v713
    %v1110 = vpack.c.b16 %v718, %v714
    %v1111 = vpack.c.b16 %v719, %v715
    %v1112 = vpack.c.b16 %v724, %v720
    %v1113 = vpack.c.b16 %v725, %v721
    %v1114 = vpack.c.b16 %v726, %v722
    %v1115 = vpack.c.b16 %v727, %v723
    %v1116 = vpack.c.b16 %v732, %v728
    %v1117 = vpack.c.b16 %v733, %v729
    %v1118 = vpack.c.b16 %v734, %v730
    %v1119 = vpack.c.b16 %v735, %v731
    %v1120 = vpack.c.b16 %v740, %v736
    %v1121 = vpack.c.b16 %v741, %v737
    %v1122 = vpack.c.b16 %v742, %v738
    %v1123 = vpack.c.b16 %v743, %v739
    %v1124 = vpack.c.b16 %v748, %v744
    %v1125 = vpack.c.b16 %v749, %v745
    %v1126 = vpack.c.b16 %v750, %v746
    %v1127 = vpack.c.b16 %v751, %v747
    %v1128 = vpack.c.b16 %v756, %v752
    %v1129 = vpack.c.b16 %v757, %v753
    %v1130 = vpack.c.b16 %v758, %v754
    %v1131 = vpack.c.b16 %v759, %v755
    %v1132 = vpack.c.b16 %v764, %v760
    %v1133 = vpack.c.b16 %v765, %v761
    %v1134 = vpack.c.b16 %v766, %v762
    %v1135 = vpack.c.b16 %v767, %v763
    %v1136 = vpack.c.b16 %v772, %v768
    %v1137 = vpack.c.b16 %v773, %v769
    %v1138 = vpack.c.b16 %v774, %v770
    %v1139 = vpack.c.b16 %v775, %v771
    %v1140 = vpack.c.b16 %v780, %v776
    %v1141 = vpack.c.b16 %v781, %v777
    %v1142 = vpack.c.b16 %v782, %v778
    %v1143 = vpack.c.b16 %v783, %v779
    %v1144 = vpack.c.b16 %v788, %v784
    %v1145 = vpack.c.b16 %v789, %v785
    %v1146 = vpack.c.b16 %v790, %v786
    %v1147 = vpack.c.b16 %v791, %v787
    %v1148 = vpack.c.b16 %v796, %v792
    %v1149 = vpack.c.b16 %v797, %v793
    %v1150 = vpack.c.b16 %v798, %v794
    %v1151 = vpack.c.b16 %v799, %v795
    %v1152 = vpack.c.b16 %v804, %v800
    %v1153 = vpack.c.b16 %v805, %v801
    %v1154 = vpack.c.b16 %v806, %v802
    %v1155 = vpack.c.b16 %v807, %v803
    %v1156 = vpack.c.b16 %v812, %v808
    %v1157 = vpack.c.b16 %v813, %v809
    %v1158 = vpack.c.b16 %v814, %v810
    %v1159 = vpack.c.b16 %v815, %v811
    %v1160 = vpack.c.b16 %v820, %v816
    %v1161 = vpack.c.b16 %v821, %v817
    %v1162 = vpack.c.b16 %v822, %v818
    %v1163 = vpack.c.b16 %v823, %v819
    %v1164 = vpack.c.b16 %v828, %v824
    %v1165 = vpack.c.b16 %v829, %v825
    %v1166 = vpack.c.b16 %v830, %v826
    %v1167 = vpack.c.b16 %v831, %v827
    %v1168 = vpack.c.b16 %v836, %v832
    %v1169 = vpack.c.b16 %v837, %v833
    %v1170 = vpack.c.b16 %v838, %v834
    %v1171 = vpack.c.b16 %v839, %v835
    %v1172 = vpack.c.b16 %v844, %v840
    %v1173 = vpack.c.b16 %v845, %v841
    %v1174 = vpack.c.b16 %v846, %v842
    %v1175 = vpack.c.b16 %v847, %v843
    %v1176 = vpack.c.b16 %v852, %v848
    %v1177 = vpack.c.b16 %v853, %v849
    %v1178 = vpack.c.b16 %v854, %v850
    %v1179 = vpack.c.b16 %v855, %v851
    %v1180 = vpack.c.b16 %v860, %v856
    %v1181 = vpack.c.b16 %v861, %v857
    %v1182 = vpack.c.b16 %v862, %v858
    %v1183 = vpack.c.b16 %v863, %v859
    %v1184 = vpack.c.b16 %v868, %v864
    %v1185 = vpack.c.b16 %v869, %v865
    %v1186 = vpack.c.b16 %v870, %v866
    %v1187 = vpack.c.b16 %v871, %v867
    %v1188 = vpack.c.b16 %v876, %v872
    %v1189 = vpack.c.b16 %v877, %v873
    %v1190 = vpack.c.b16 %v878, %v874
    %v1191 = vpack.c.b16 %v879, %v875
    %v1192 = vpack.c.b16 %v884, %v880
    %v1193 = vpack.c.b16 %v885, %v881
    %v1194 = vpack.c.b16 %v886, %v882
    %v1195 = vpack.c.b16 %v887, %v883
    %v1196 = vpack.c.b16 %v892, %v888
    %v1197 = vpack.c.b16 %v893, %v889
    %v1198 = vpack.c.b16 %v894, %v890
    %v1199 = vpack.c.b16 %v895, %v891
    %v1200 = vpack.c.b16 %v900, %v896
    %v1201 = vpack.c.b16 %v901, %v897
    %v1202 = vpack.c.b16 %v902, %v898
    %v1203 = vpack.c.b16 %v903, %v899
    %v1204 = vpack.c.b16 %v908, %v904
    %v1205 = vpack.c.b16 %v909, %v905
    %v1206 = vpack.c.b16 %v910, %v906
    %v1207 = vpack.c.b16 %v911, %v907
    %v1208 = vpack.c.b16 %v916, %v912
    %v1209 = vpack.c.b16 %v917, %v913
    %v1210 = vpack.c.b16 %v918, %v914
    %v1211 = vpack.c.b16 %v919, %v915
    %v1212 = vpack.c.b16 %v924, %v920
    %v1213 = vpack.c.b16 %v925, %v921
    %v1214 = vpack.c.b16 %v926, %v922
    %v1215 = vpack.c.b16 %v927, %v923
    %v1216 = vpack.c.b16 %v932, %v928
    %v1217 = vpack.c.b16 %v933, %v929
    %v1218 = vpack.c.b16 %v934, %v930
    %v1219 = vpack.c.b16 %v935, %v931
    %v1220 = vpack.c.b16 %v940, %v936
    %v1221 = vpack.c.b16 %v941, %v937
    %v1222 = vpack.c.b16 %v942, %v938
    %v1223 = vpack.c.b16 %v943, %v939
    %v1224 = vpack.c.b16 %v948, %v944
    %v1225 = vpack.c.b16 %v949, %v945
    %v1226 = vpack.c.b16 %v950, %v946
    %v1227 = vpack.c.b16 %v951, %v947
    %v1228 = vpack.c.b16 %v956, %v952
    %v1229 = vpack.c.b16 %v957, %v953
    %v1230 = vpack.c.b16 %v958, %v954
    %v1231 = vpack.c.b16 %v959, %v955
    %v1232 = vpack.c.b16 %v964, %v960
    %v1233 = vpack.c.b16 %v965, %v961
    %v1234 = vpack.c.b16 %v966, %v962
    %v1235 = vpack.c.b16 %v967, %v963
    %v1236 = vpack.c.b16 %v972, %v968
    %v1237 = vpack.c.b16 %v973, %v969
    %v1238 = vpack.c.b16 %v974, %v970
    %v1239 = vpack.c.b16 %v975, %v971
    %v1240 = vpack.c.b16 %v980, %v976
    %v1241 = vpack.c.b16 %v981, %v977
    %v1242 = vpack.c.b16 %v982, %v978
    %v1243 = vpack.c.b16 %v983, %v979
    %v1244 = vpack.c.b16 %v988, %v984
    %v1245 = vpack.c.b16 %v989, %v985
    %v1246 = vpack.c.b16 %v990, %v986
    %v1247 = vpack.c.b16 %v991, %v987
    %v1248 = vpack.c.b16 %v996, %v992
    %v1249 = vpack.c.b16 %v997, %v993
    %v1250 = vpack.c.b16 %v998, %v994
    %v1251 = vpack.c.b16 %v999, %v995
    %v1252 = vpack.c.b16 %v1004, %v1000
    %v1253 = vpack.c.b16 %v1005, %v1001
    %v1254 = vpack.c.b16 %v1006, %v1002
    %v1255 = vpack.c.b16 %v1007, %v1003
    %v1256 = vpack.c.b16 %v1012, %v1008
    %v1257 = vpack.c.b16 %v1013, %v1009
    %v1258 = vpack.c.b16 %v1014, %v1010
    %v1259 = vpack.c.b16 %v1015, %v1011
    %v1260 = vpack.c.b16 %v1020, %v1016
    %v1261 = vpack.c.b16 %v1021, %v1017
    %v1262 = vpack.c.b16 %v1022, %v1018
    %v1263 = vpack.c.b16 %v1023, %v1019
    %v1264 = vpack.c.b16 %v1028, %v1024
    %v1265 = vpack.c.b16 %v1029, %v1025
    %v1266 = vpack.c.b16 %v1030, %v1026
    %v1267 = vpack.c.b16 %v1031, %v1027
    %v1268 = vpack.c.b16 %v1036, %v1032
    %v1269 = vpack.c.b16 %v1037, %v1033
    %v1270 = vpack.c.b16 %v1038, %v1034
    %v1271 = vpack.c.b16 %v1039, %v1035
    %v1272 = vpack.c.b16 %v1044, %v1040
    %v1273 = vpack.c.b16 %v1045, %v1041
    %v1274 = vpack.c.b16 %v1046, %v1042
    %v1275 = vpack.c.b16 %v1047, %v1043
    %v1276 = vpack.c.b16 %v1052, %v1048
    %v1277 = vpack.c.b16 %v1053, %v1049
    %v1278 = vpack.c.b16 %v1054, %v1050
    %v1279 = vpack.c.b16 %v1055, %v1051
    %1504 = vmatprep.subr.bf16.mxu0 %v1085
    %1505 = vmatpush1.bf16.msra.mxu0 %v1084
    %1506 = vmatprep.subr.bf16.mxu0 %v1081
    %1507 = vmatpush1.bf16.msra.mxu0 %v1080
    %1508 = vmatprep.subr.bf16.mxu0 %v1077
    %1509 = vmatpush1.bf16.msra.mxu0 %v1076
    %1510 = vmatprep.subr.bf16.mxu0 %v1073
    %1511 = vmatpush1.bf16.msra.mxu0 %v1072
    %1512 = vmatprep.subr.bf16.mxu0 %v1069
    %1513 = vmatpush1.bf16.msra.mxu0 %v1068
    %1514 = vmatprep.subr.bf16.mxu0 %v1065
    %1515 = vmatpush1.bf16.msra.mxu0 %v1064
    %1516 = vmatprep.subr.bf16.mxu0 %v1061
    %1517 = vmatpush1.bf16.msra.mxu0 %v1060
    %1518 = vmatprep.subr.bf16.mxu0 %v1057
    %1519 = vmatpush1.bf16.msra.mxu0 %v1056
    %1520 = vmatprep.subr.bf16.mxu0 %v1117
    %1521 = vmatpush2.bf16.msra.mxu0 %v1116
    %1522 = vmatprep.subr.bf16.mxu0 %v1113
    %1523 = vmatpush2.bf16.msra.mxu0 %v1112
    %1524 = vmatprep.subr.bf16.mxu0 %v1109
    %1525 = vmatpush2.bf16.msra.mxu0 %v1108
    %1526 = vmatprep.subr.bf16.mxu0 %v1105
    %1527 = vmatpush2.bf16.msra.mxu0 %v1104
    %1528 = vmatprep.subr.bf16.mxu0 %v1101
    %1529 = vmatpush2.bf16.msra.mxu0 %v1100
    %1530 = vmatprep.subr.bf16.mxu0 %v1097
    %1531 = vmatpush2.bf16.msra.mxu0 %v1096
    %1532 = vmatprep.subr.bf16.mxu0 %v1093
    %1533 = vmatpush2.bf16.msra.mxu0 %v1092
    %1534 = vmatprep.subr.bf16.mxu0 %v1089
    %1535 = vmatpush2.bf16.msra.mxu0 %v1088
    %1536 = vmatprep.mubr.bf16.mxu0 %v371
    %1537 = vmatmul.mubr.bf16.gmra.mxu0 %v370
    %v1538 = vpop.f32.mrf.mxu0
    %v1539 = vadd.f32 %v346, %v1538
    %v1540 = vpop.f32.mrf.mxu0
    %v1541 = vadd.f32 %v350, %v1540
    %v1542 = vpop.f32.mrf.mxu0
    %v1543 = vpop.f32.mrf.mxu0
    %1544 = vdwg.mxu0
    %1545 = vmatprep.subr.bf16.mxu0 %v1149
    %1546 = vmatpush1.bf16.msra.mxu0 %v1148
    %1547 = vmatprep.subr.bf16.mxu0 %v1145
    %1548 = vmatpush1.bf16.msra.mxu0 %v1144
    %1549 = vmatprep.subr.bf16.mxu0 %v1141
    %1550 = vmatpush1.bf16.msra.mxu0 %v1140
    %1551 = vmatprep.subr.bf16.mxu0 %v1137
    %1552 = vmatpush1.bf16.msra.mxu0 %v1136
    %1553 = vmatprep.subr.bf16.mxu0 %v1133
    %1554 = vmatpush1.bf16.msra.mxu0 %v1132
    %1555 = vmatprep.subr.bf16.mxu0 %v1129
    %1556 = vmatpush1.bf16.msra.mxu0 %v1128
    %1557 = vmatprep.subr.bf16.mxu0 %v1125
    %1558 = vmatpush1.bf16.msra.mxu0 %v1124
    %1559 = vmatprep.subr.bf16.mxu0 %v1121
    %1560 = vmatpush1.bf16.msra.mxu0 %v1120
    %1561 = vmatprep.subr.bf16.mxu0 %v1181
    %1562 = vmatpush2.bf16.msra.mxu0 %v1180
    %1563 = vmatprep.subr.bf16.mxu0 %v1177
    %1564 = vmatpush2.bf16.msra.mxu0 %v1176
    %1565 = vmatprep.subr.bf16.mxu0 %v1173
    %1566 = vmatpush2.bf16.msra.mxu0 %v1172
    %1567 = vmatprep.subr.bf16.mxu0 %v1169
    %1568 = vmatpush2.bf16.msra.mxu0 %v1168
    %1569 = vmatprep.subr.bf16.mxu0 %v1165
    %1570 = vmatpush2.bf16.msra.mxu0 %v1164
    %1571 = vmatprep.subr.bf16.mxu0 %v1161
    %1572 = vmatpush2.bf16.msra.mxu0 %v1160
    %1573 = vmatprep.subr.bf16.mxu0 %v1157
    %1574 = vmatpush2.bf16.msra.mxu0 %v1156
    %1575 = vmatprep.subr.bf16.mxu0 %v1153
    %1576 = vmatpush2.bf16.msra.mxu0 %v1152
    %1577 = vmatprep.mubr.bf16.mxu0 %v373
    %1578 = vmatmul.mubr.bf16.gmra.mxu0 %v372
    %v1579 = vpop.f32.mrf.mxu0
    %v1580 = vadd.f32 %v1539, %v1579
    %v1581 = vpop.f32.mrf.mxu0
    %v1582 = vadd.f32 %v1541, %v1581
    %v1583 = vpop.f32.mrf.mxu0
    %v1584 = vpop.f32.mrf.mxu0
    %1585 = vdwg.mxu0
    %1586 = vmatprep.subr.bf16.mxu0 %v1213
    %1587 = vmatpush1.bf16.msra.mxu0 %v1212
    %1588 = vmatprep.subr.bf16.mxu0 %v1209
    %1589 = vmatpush1.bf16.msra.mxu0 %v1208
    %1590 = vmatprep.subr.bf16.mxu0 %v1205
    %1591 = vmatpush1.bf16.msra.mxu0 %v1204
    %1592 = vmatprep.subr.bf16.mxu0 %v1201
    %1593 = vmatpush1.bf16.msra.mxu0 %v1200
    %1594 = vmatprep.subr.bf16.mxu0 %v1197
    %1595 = vmatpush1.bf16.msra.mxu0 %v1196
    %1596 = vmatprep.subr.bf16.mxu0 %v1193
    %1597 = vmatpush1.bf16.msra.mxu0 %v1192
    %1598 = vmatprep.subr.bf16.mxu0 %v1189
    %1599 = vmatpush1.bf16.msra.mxu0 %v1188
    %1600 = vmatprep.subr.bf16.mxu0 %v1185
    %1601 = vmatpush1.bf16.msra.mxu0 %v1184
    %1602 = vmatprep.subr.bf16.mxu0 %v1245
    %1603 = vmatpush2.bf16.msra.mxu0 %v1244
    %1604 = vmatprep.subr.bf16.mxu0 %v1241
    %1605 = vmatpush2.bf16.msra.mxu0 %v1240
    %1606 = vmatprep.subr.bf16.mxu0 %v1237
    %1607 = vmatpush2.bf16.msra.mxu0 %v1236
    %1608 = vmatprep.subr.bf16.mxu0 %v1233
    %1609 = vmatpush2.bf16.msra.mxu0 %v1232
    %1610 = vmatprep.subr.bf16.mxu0 %v1229
    %1611 = vmatpush2.bf16.msra.mxu0 %v1228
    %1612 = vmatprep.subr.bf16.mxu0 %v1225
    %1613 = vmatpush2.bf16.msra.mxu0 %v1224
    %1614 = vmatprep.subr.bf16.mxu0 %v1221
    %1615 = vmatpush2.bf16.msra.mxu0 %v1220
    %1616 = vmatprep.subr.bf16.mxu0 %v1217
    %1617 = vmatpush2.bf16.msra.mxu0 %v1216
    %1618 = vmatprep.mubr.bf16.mxu0 %v375
    %1619 = vmatmul.mubr.bf16.gmra.mxu0 %v374
    %v1620 = vpop.f32.mrf.mxu0
    %v1621 = vadd.f32 %v1580, %v1620
    %v1622 = vpop.f32.mrf.mxu0
    %v1623 = vadd.f32 %v1582, %v1622
    %v1624 = vpop.f32.mrf.mxu0
    %v1625 = vpop.f32.mrf.mxu0
    %1626 = vdwg.mxu0
    %1627 = vmatprep.subr.bf16.mxu0 %v1277
    %1628 = vmatpush1.bf16.msra.mxu0 %v1276
    %1629 = vmatprep.subr.bf16.mxu0 %v1273
    %1630 = vmatpush1.bf16.msra.mxu0 %v1272
    %1631 = vmatprep.subr.bf16.mxu0 %v1269
    %1632 = vmatpush1.bf16.msra.mxu0 %v1268
    %1633 = vmatprep.subr.bf16.mxu0 %v1265
    %1634 = vmatpush1.bf16.msra.mxu0 %v1264
    %1635 = vmatprep.subr.bf16.mxu0 %v1261
    %1636 = vmatpush1.bf16.msra.mxu0 %v1260
    %1637 = vmatprep.subr.bf16.mxu0 %v1257
    %1638 = vmatpush1.bf16.msra.mxu0 %v1256
    %1639 = vmatprep.subr.bf16.mxu0 %v1253
    %1640 = vmatpush1.bf16.msra.mxu0 %v1252
    %1641 = vmatprep.subr.bf16.mxu0 %v1249
    %1642 = vmatpush1.bf16.msra.mxu0 %v1248
    %1643 = vmatprep.subr.bf16.mxu0 0
    %1644 = vmatpush2.bf16.msra.mxu0 0
    %1645 = vmatprep.subr.bf16.mxu0 0
    %1646 = vmatpush2.bf16.msra.mxu0 0
    %1647 = vmatprep.subr.bf16.mxu0 0
    %1648 = vmatpush2.bf16.msra.mxu0 0
    %1649 = vmatprep.subr.bf16.mxu0 0
    %1650 = vmatpush2.bf16.msra.mxu0 0
    %1651 = vmatprep.subr.bf16.mxu0 0
    %1652 = vmatpush2.bf16.msra.mxu0 0
    %1653 = vmatprep.subr.bf16.mxu0 0
    %1654 = vmatpush2.bf16.msra.mxu0 0
    %1655 = vmatprep.subr.bf16.mxu0 0
    %1656 = vmatpush2.bf16.msra.mxu0 0
    %1657 = vmatprep.subr.bf16.mxu0 0
    %1658 = vmatpush2.bf16.msra.mxu0 0
    %1659 = vmatprep.mubr.bf16.mxu0 0
    %1660 = vmatmul.mubr.bf16.gmra.mxu0 %v376
    %v1661 = vpop.f32.mrf.mxu0
    %v1662 = vadd.f32 %v1621, %v1661
    %v1663 = vpop.f32.mrf.mxu0
    %v1664 = vadd.f32 %v1623, %v1663
    %v1665 = vpop.f32.mrf.mxu0
    %v1666 = vpop.f32.mrf.mxu0
    %1667 = vdwg.mxu0
    %1668 = vmatprep.subr.bf16.mxu0 %v1087
    %1669 = vmatpush1.bf16.msra.mxu0 %v1086
    %1670 = vmatprep.subr.bf16.mxu0 %v1083
    %1671 = vmatpush1.bf16.msra.mxu0 %v1082
    %1672 = vmatprep.subr.bf16.mxu0 %v1079
    %1673 = vmatpush1.bf16.msra.mxu0 %v1078
    %1674 = vmatprep.subr.bf16.mxu0 %v1075
    %1675 = vmatpush1.bf16.msra.mxu0 %v1074
    %1676 = vmatprep.subr.bf16.mxu0 %v1071
    %1677 = vmatpush1.bf16.msra.mxu0 %v1070
    %1678 = vmatprep.subr.bf16.mxu0 %v1067
    %1679 = vmatpush1.bf16.msra.mxu0 %v1066
    %1680 = vmatprep.subr.bf16.mxu0 %v1063
    %1681 = vmatpush1.bf16.msra.mxu0 %v1062
    %1682 = vmatprep.subr.bf16.mxu0 %v1059
    %1683 = vmatpush1.bf16.msra.mxu0 %v1058
    %1684 = vmatprep.subr.bf16.mxu0 %v1119
    %1685 = vmatpush2.bf16.msra.mxu0 %v1118
    %1686 = vmatprep.subr.bf16.mxu0 %v1115
    %1687 = vmatpush2.bf16.msra.mxu0 %v1114
    %1688 = vmatprep.subr.bf16.mxu0 %v1111
    %1689 = vmatpush2.bf16.msra.mxu0 %v1110
    %1690 = vmatprep.subr.bf16.mxu0 %v1107
    %1691 = vmatpush2.bf16.msra.mxu0 %v1106
    %1692 = vmatprep.subr.bf16.mxu0 %v1103
    %1693 = vmatpush2.bf16.msra.mxu0 %v1102
    %1694 = vmatprep.subr.bf16.mxu0 %v1099
    %1695 = vmatpush2.bf16.msra.mxu0 %v1098
    %1696 = vmatprep.subr.bf16.mxu0 %v1095
    %1697 = vmatpush2.bf16.msra.mxu0 %v1094
    %1698 = vmatprep.subr.bf16.mxu0 %v1091
    %1699 = vmatpush2.bf16.msra.mxu0 %v1090
    %1700 = vmatprep.mubr.bf16.mxu0 %v371
    %1701 = vmatmul.mubr.bf16.gmra.mxu0 %v370
    %v1702 = vpop.f32.mrf.mxu0
    %v1703 = vadd.f32 %v354, %v1702
    %v1704 = vpop.f32.mrf.mxu0
    %v1705 = vadd.f32 %v358, %v1704
    %v1706 = vpop.f32.mrf.mxu0
    %v1707 = vpop.f32.mrf.mxu0
    %1708 = vdwg.mxu0
    %1709 = vmatprep.subr.bf16.mxu0 %v1151
    %1710 = vmatpush1.bf16.msra.mxu0 %v1150
    %1711 = vmatprep.subr.bf16.mxu0 %v1147
    %1712 = vmatpush1.bf16.msra.mxu0 %v1146
    %1713 = vmatprep.subr.bf16.mxu0 %v1143
    %1714 = vmatpush1.bf16.msra.mxu0 %v1142
    %1715 = vmatprep.subr.bf16.mxu0 %v1139
    %1716 = vmatpush1.bf16.msra.mxu0 %v1138
    %1717 = vmatprep.subr.bf16.mxu0 %v1135
    %1718 = vmatpush1.bf16.msra.mxu0 %v1134
    %1719 = vmatprep.subr.bf16.mxu0 %v1131
    %1720 = vmatpush1.bf16.msra.mxu0 %v1130
    %1721 = vmatprep.subr.bf16.mxu0 %v1127
    %1722 = vmatpush1.bf16.msra.mxu0 %v1126
    %1723 = vmatprep.subr.bf16.mxu0 %v1123
    %1724 = vmatpush1.bf16.msra.mxu0 %v1122
    %1725 = vmatprep.subr.bf16.mxu0 %v1183
    %1726 = vmatpush2.bf16.msra.mxu0 %v1182
    %1727 = vmatprep.subr.bf16.mxu0 %v1179
    %1728 = vmatpush2.bf16.msra.mxu0 %v1178
    %1729 = vmatprep.subr.bf16.mxu0 %v1175
    %1730 = vmatpush2.bf16.msra.mxu0 %v1174
    %1731 = vmatprep.subr.bf16.mxu0 %v1171
    %1732 = vmatpush2.bf16.msra.mxu0 %v1170
    %1733 = vmatprep.subr.bf16.mxu0 %v1167
    %1734 = vmatpush2.bf16.msra.mxu0 %v1166
    %1735 = vmatprep.subr.bf16.mxu0 %v1163
    %1736 = vmatpush2.bf16.msra.mxu0 %v1162
    %1737 = vmatprep.subr.bf16.mxu0 %v1159
    %1738 = vmatpush2.bf16.msra.mxu0 %v1158
    %1739 = vmatprep.subr.bf16.mxu0 %v1155
    %1740 = vmatpush2.bf16.msra.mxu0 %v1154
    %1741 = vmatprep.mubr.bf16.mxu0 %v373
    %1742 = vmatmul.mubr.bf16.gmra.mxu0 %v372
    %v1743 = vpop.f32.mrf.mxu0
    %v1744 = vadd.f32 %v1703, %v1743
    %v1745 = vpop.f32.mrf.mxu0
    %v1746 = vadd.f32 %v1705, %v1745
    %v1747 = vpop.f32.mrf.mxu0
    %v1748 = vpop.f32.mrf.mxu0
    %1749 = vdwg.mxu0
    %1750 = vmatprep.subr.bf16.mxu0 %v1215
    %1751 = vmatpush1.bf16.msra.mxu0 %v1214
    %1752 = vmatprep.subr.bf16.mxu0 %v1211
    %1753 = vmatpush1.bf16.msra.mxu0 %v1210
    %1754 = vmatprep.subr.bf16.mxu0 %v1207
    %1755 = vmatpush1.bf16.msra.mxu0 %v1206
    %1756 = vmatprep.subr.bf16.mxu0 %v1203
    %1757 = vmatpush1.bf16.msra.mxu0 %v1202
    %1758 = vmatprep.subr.bf16.mxu0 %v1199
    %1759 = vmatpush1.bf16.msra.mxu0 %v1198
    %1760 = vmatprep.subr.bf16.mxu0 %v1195
    %1761 = vmatpush1.bf16.msra.mxu0 %v1194
    %1762 = vmatprep.subr.bf16.mxu0 %v1191
    %1763 = vmatpush1.bf16.msra.mxu0 %v1190
    %1764 = vmatprep.subr.bf16.mxu0 %v1187
    %1765 = vmatpush1.bf16.msra.mxu0 %v1186
    %1766 = vmatprep.subr.bf16.mxu0 %v1247
    %1767 = vmatpush2.bf16.msra.mxu0 %v1246
    %1768 = vmatprep.subr.bf16.mxu0 %v1243
    %1769 = vmatpush2.bf16.msra.mxu0 %v1242
    %1770 = vmatprep.subr.bf16.mxu0 %v1239
    %1771 = vmatpush2.bf16.msra.mxu0 %v1238
    %1772 = vmatprep.subr.bf16.mxu0 %v1235
    %1773 = vmatpush2.bf16.msra.mxu0 %v1234
    %1774 = vmatprep.subr.bf16.mxu0 %v1231
    %1775 = vmatpush2.bf16.msra.mxu0 %v1230
    %1776 = vmatprep.subr.bf16.mxu0 %v1227
    %1777 = vmatpush2.bf16.msra.mxu0 %v1226
    %1778 = vmatprep.subr.bf16.mxu0 %v1223
    %1779 = vmatpush2.bf16.msra.mxu0 %v1222
    %1780 = vmatprep.subr.bf16.mxu0 %v1219
    %1781 = vmatpush2.bf16.msra.mxu0 %v1218
    %1782 = vmatprep.mubr.bf16.mxu0 %v375
    %1783 = vmatmul.mubr.bf16.gmra.mxu0 %v374
    %v1784 = vpop.f32.mrf.mxu0
    %v1785 = vadd.f32 %v1744, %v1784
    %v1786 = vpop.f32.mrf.mxu0
    %v1787 = vadd.f32 %v1746, %v1786
    %v1788 = vpop.f32.mrf.mxu0
    %v1789 = vpop.f32.mrf.mxu0
    %1790 = vdwg.mxu0
    %1791 = vmatprep.subr.bf16.mxu0 %v1279
    %1792 = vmatpush1.bf16.msra.mxu0 %v1278
    %1793 = vmatprep.subr.bf16.mxu0 %v1275
    %1794 = vmatpush1.bf16.msra.mxu0 %v1274
    %1795 = vmatprep.subr.bf16.mxu0 %v1271
    %1796 = vmatpush1.bf16.msra.mxu0 %v1270
    %1797 = vmatprep.subr.bf16.mxu0 %v1267
    %1798 = vmatpush1.bf16.msra.mxu0 %v1266
    %1799 = vmatprep.subr.bf16.mxu0 %v1263
    %1800 = vmatpush1.bf16.msra.mxu0 %v1262
    %1801 = vmatprep.subr.bf16.mxu0 %v1259
    %1802 = vmatpush1.bf16.msra.mxu0 %v1258
    %1803 = vmatprep.subr.bf16.mxu0 %v1255
    %1804 = vmatpush1.bf16.msra.mxu0 %v1254
    %1805 = vmatprep.subr.bf16.mxu0 %v1251
    %1806 = vmatpush1.bf16.msra.mxu0 %v1250
    %1807 = vmatprep.subr.bf16.mxu0 0
    %1808 = vmatpush2.bf16.msra.mxu0 0
    %1809 = vmatprep.subr.bf16.mxu0 0
    %1810 = vmatpush2.bf16.msra.mxu0 0
    %1811 = vmatprep.subr.bf16.mxu0 0
    %1812 = vmatpush2.bf16.msra.mxu0 0
    %1813 = vmatprep.subr.bf16.mxu0 0
    %1814 = vmatpush2.bf16.msra.mxu0 0
    %1815 = vmatprep.subr.bf16.mxu0 0
    %1816 = vmatpush2.bf16.msra.mxu0 0
    %1817 = vmatprep.subr.bf16.mxu0 0
    %1818 = vmatpush2.bf16.msra.mxu0 0
    %1819 = vmatprep.subr.bf16.mxu0 0
    %1820 = vmatpush2.bf16.msra.mxu0 0
    %1821 = vmatprep.subr.bf16.mxu0 0
    %1822 = vmatpush2.bf16.msra.mxu0 0
    %1823 = vmatprep.mubr.bf16.mxu0 0
    %1824 = vmatmul.mubr.bf16.gmra.mxu0 %v376
    %v1825 = vpop.f32.mrf.mxu0
    %v1826 = vadd.f32 %v1785, %v1825
    %v1827 = vpop.f32.mrf.mxu0
    %v1828 = vadd.f32 %v1787, %v1827
    %v1829 = vpop.f32.mrf.mxu0
    %v1830 = vpop.f32.mrf.mxu0
    %1831 = vdwg.mxu0
    %v1832 = vmax.f32 %v1662, 0.0
    %v1833 = vmax.f32 %v1664, 0.0
    %v1834 = vmax.f32 %v1826, 0.0
    %v1835 = vmax.f32 %v1828, 0.0
    %v1836 = vpack.c.bf16 %v1832, %v1832
    %v1837 = vpack.c.bf16 %v1833, %v1833
    %v1838 = vpack.c.bf16 %v1834, %v1834
    %v1839 = vpack.c.bf16 %v1835, %v1835
    %v1840 = vld [vmem:[#allocation8] sm:$0xff]
    %v1841 = vld [vmem:[#allocation8 + $0x8] sm:$0xff]
    %v1842 = vld [vmem:[#allocation8 + $0x10] sm:$0xff]
    %v1843 = vld [vmem:[#allocation8 + $0x18] sm:$0xff]
    %v1844 = vld [vmem:[#allocation8 + $0x20] sm:$0xff]
    %v1845 = vld [vmem:[#allocation8 + $0x28] sm:$0xff]
    %v1846 = vld [vmem:[#allocation8 + $0x30] sm:$0xff]
    %v1847 = vld [vmem:[#allocation8 + $0x38] sm:$0xff]
    %v1848 = vld [vmem:[#allocation8 + $0x40] sm:$0xff]
    %v1849 = vld [vmem:[#allocation8 + $0x48] sm:$0xff]
    %v1850 = vld [vmem:[#allocation8 + $0x50] sm:$0xff]
    %v1851 = vld [vmem:[#allocation8 + $0x58] sm:$0xff]
    %v1852 = vld [vmem:[#allocation8 + $0x60] sm:$0xff]
    %v1853 = vld [vmem:[#allocation8 + $0x68] sm:$0xff]
    %v1854 = vld [vmem:[#allocation8 + $0x70] sm:$0xff]
    %v1855 = vld [vmem:[#allocation8 + $0x78] sm:$0xff]
    %v1856 = vld [vmem:[#allocation8 + $0x80] sm:$0xff]
    %v1857 = vld [vmem:[#allocation8 + $0x88] sm:$0xff]
    %v1858 = vld [vmem:[#allocation8 + $0x90] sm:$0xff]
    %v1859 = vld [vmem:[#allocation8 + $0x98] sm:$0xff]
    %v1860 = vld [vmem:[#allocation8 + $0xa0] sm:$0xff]
    %v1861 = vld [vmem:[#allocation8 + $0xa8] sm:$0xff]
    %v1862 = vld [vmem:[#allocation8 + $0xb0] sm:$0xff]
    %v1863 = vld [vmem:[#allocation8 + $0xb8] sm:$0xff]
    %v1864 = vld [vmem:[#allocation8 + $0xc0] sm:$0xff]
    %v1865 = vld [vmem:[#allocation8 + $0xc8] sm:$0xff]
    %v1866 = vld [vmem:[#allocation8 + $0xd0] sm:$0xff]
    %v1867 = vld [vmem:[#allocation8 + $0xd8] sm:$0xff]
    %v1868 = vld [vmem:[#allocation8 + $0xe0] sm:$0xff]
    %v1869 = vld [vmem:[#allocation8 + $0xe8] sm:$0xff]
    %v1870 = vld [vmem:[#allocation8 + $0xf0] sm:$0xff]
    %v1871 = vld [vmem:[#allocation8 + $0xf8] sm:$0xff]
    %v1872 = vld [vmem:[#allocation8 + $0x100] sm:$0xff]
    %v1873 = vld [vmem:[#allocation8 + $0x108] sm:$0xff]
    %v1874 = vld [vmem:[#allocation8 + $0x110] sm:$0xff]
    %v1875 = vld [vmem:[#allocation8 + $0x118] sm:$0xff]
    %v1876 = vld [vmem:[#allocation8 + $0x120] sm:$0xff]
    %v1877 = vld [vmem:[#allocation8 + $0x128] sm:$0xff]
    %v1878 = vld [vmem:[#allocation8 + $0x130] sm:$0xff]
    %v1879 = vld [vmem:[#allocation8 + $0x138] sm:$0xff]
    %v1880 = vld [vmem:[#allocation8 + $0x140] sm:$0xff]
    %v1881 = vld [vmem:[#allocation8 + $0x148] sm:$0xff]
    %v1882 = vld [vmem:[#allocation8 + $0x150] sm:$0xff]
    %v1883 = vld [vmem:[#allocation8 + $0x158] sm:$0xff]
    %v1884 = vld [vmem:[#allocation8 + $0x160] sm:$0xff]
    %v1885 = vld [vmem:[#allocation8 + $0x168] sm:$0xff]
    %v1886 = vld [vmem:[#allocation8 + $0x170] sm:$0xff]
    %v1887 = vld [vmem:[#allocation8 + $0x178] sm:$0xff]
    %v1888 = vld [vmem:[#allocation8 + $0x180] sm:$0xff]
    %v1889 = vld [vmem:[#allocation8 + $0x188] sm:$0xff]
    %v1890 = vld [vmem:[#allocation8 + $0x190] sm:$0xff]
    %v1891 = vld [vmem:[#allocation8 + $0x198] sm:$0xff]
    %v1892 = vld [vmem:[#allocation8 + $0x1a0] sm:$0xff]
    %v1893 = vld [vmem:[#allocation8 + $0x1a8] sm:$0xff]
    %v1894 = vld [vmem:[#allocation8 + $0x1b0] sm:$0xff]
    %v1895 = vld [vmem:[#allocation8 + $0x1b8] sm:$0xff]
    %v1896 = vld [vmem:[#allocation8 + $0x1c0] sm:$0xff]
    %v1897 = vld [vmem:[#allocation8 + $0x1c8] sm:$0xff]
    %v1898 = vld [vmem:[#allocation8 + $0x1d0] sm:$0xff]
    %v1899 = vld [vmem:[#allocation8 + $0x1d8] sm:$0xff]
    %v1900 = vld [vmem:[#allocation8 + $0x1e0] sm:$0xff]
    %v1901 = vld [vmem:[#allocation8 + $0x1e8] sm:$0xff]
    %v1902 = vld [vmem:[#allocation8 + $0x1f0] sm:$0xff]
    %v1903 = vld [vmem:[#allocation8 + $0x1f8] sm:$0xff]
    %v1904 = vld [vmem:[#allocation8 + $0x200] sm:$0xff]
    %v1905 = vld [vmem:[#allocation8 + $0x208] sm:$0xff]
    %v1906 = vld [vmem:[#allocation8 + $0x210] sm:$0xff]
    %v1907 = vld [vmem:[#allocation8 + $0x218] sm:$0xff]
    %v1908 = vld [vmem:[#allocation8 + $0x220] sm:$0xff]
    %v1909 = vld [vmem:[#allocation8 + $0x228] sm:$0xff]
    %v1910 = vld [vmem:[#allocation8 + $0x230] sm:$0xff]
    %v1911 = vld [vmem:[#allocation8 + $0x238] sm:$0xff]
    %v1912 = vld [vmem:[#allocation8 + $0x240] sm:$0xff]
    %v1913 = vld [vmem:[#allocation8 + $0x248] sm:$0xff]
    %v1914 = vld [vmem:[#allocation8 + $0x250] sm:$0xff]
    %v1915 = vld [vmem:[#allocation8 + $0x258] sm:$0xff]
    %v1916 = vld [vmem:[#allocation8 + $0x260] sm:$0xff]
    %v1917 = vld [vmem:[#allocation8 + $0x268] sm:$0xff]
    %v1918 = vld [vmem:[#allocation8 + $0x270] sm:$0xff]
    %v1919 = vld [vmem:[#allocation8 + $0x278] sm:$0xff]
    %v1920 = vld [vmem:[#allocation8 + $0x280] sm:$0xff]
    %v1921 = vld [vmem:[#allocation8 + $0x288] sm:$0xff]
    %v1922 = vld [vmem:[#allocation8 + $0x290] sm:$0xff]
    %v1923 = vld [vmem:[#allocation8 + $0x298] sm:$0xff]
    %v1924 = vld [vmem:[#allocation8 + $0x2a0] sm:$0xff]
    %v1925 = vld [vmem:[#allocation8 + $0x2a8] sm:$0xff]
    %v1926 = vld [vmem:[#allocation8 + $0x2b0] sm:$0xff]
    %v1927 = vld [vmem:[#allocation8 + $0x2b8] sm:$0xff]
    %v1928 = vld [vmem:[#allocation8 + $0x2c0] sm:$0xff]
    %v1929 = vld [vmem:[#allocation8 + $0x2c8] sm:$0xff]
    %v1930 = vld [vmem:[#allocation8 + $0x2d0] sm:$0xff]
    %v1931 = vld [vmem:[#allocation8 + $0x2d8] sm:$0xff]
    %v1932 = vld [vmem:[#allocation8 + $0x2e0] sm:$0xff]
    %v1933 = vld [vmem:[#allocation8 + $0x2e8] sm:$0xff]
    %v1934 = vld [vmem:[#allocation8 + $0x2f0] sm:$0xff]
    %v1935 = vld [vmem:[#allocation8 + $0x2f8] sm:$0xff]
    %v1936 = vld [vmem:[#allocation8 + $0x300] sm:$0xff]
    %v1937 = vld [vmem:[#allocation8 + $0x308] sm:$0xff]
    %v1938 = vld [vmem:[#allocation8 + $0x310] sm:$0xff]
    %v1939 = vld [vmem:[#allocation8 + $0x318] sm:$0xff]
    %v1940 = vld [vmem:[#allocation8 + $0x320] sm:$0xff]
    %v1941 = vld [vmem:[#allocation8 + $0x328] sm:$0xff]
    %v1942 = vld [vmem:[#allocation8 + $0x330] sm:$0xff]
    %v1943 = vld [vmem:[#allocation8 + $0x338] sm:$0xff]
    %v1944 = vld [vmem:[#allocation8 + $0x340] sm:$0xff]
    %v1945 = vld [vmem:[#allocation8 + $0x348] sm:$0xff]
    %v1946 = vld [vmem:[#allocation8 + $0x350] sm:$0xff]
    %v1947 = vld [vmem:[#allocation8 + $0x358] sm:$0xff]
    %v1948 = vld [vmem:[#allocation8 + $0x360] sm:$0xff]
    %v1949 = vld [vmem:[#allocation8 + $0x368] sm:$0xff]
    %v1950 = vld [vmem:[#allocation8 + $0x370] sm:$0xff]
    %v1951 = vld [vmem:[#allocation8 + $0x378] sm:$0xff]
    %v1952 = vld [vmem:[#allocation8 + $0x380] sm:$0xff]
    %v1953 = vld [vmem:[#allocation8 + $0x388] sm:$0xff]
    %v1954 = vld [vmem:[#allocation8 + $0x390] sm:$0xff]
    %v1955 = vld [vmem:[#allocation8 + $0x398] sm:$0xff]
    %v1956 = vld [vmem:[#allocation8 + $0x3a0] sm:$0xff]
    %v1957 = vld [vmem:[#allocation8 + $0x3a8] sm:$0xff]
    %v1958 = vld [vmem:[#allocation8 + $0x3b0] sm:$0xff]
    %v1959 = vld [vmem:[#allocation8 + $0x3b8] sm:$0xff]
    %v1960 = vld [vmem:[#allocation8 + $0x3c0] sm:$0xff]
    %v1961 = vld [vmem:[#allocation8 + $0x3c8] sm:$0xff]
    %v1962 = vld [vmem:[#allocation8 + $0x3d0] sm:$0xff]
    %v1963 = vld [vmem:[#allocation8 + $0x3d8] sm:$0xff]
    %v1964 = vld [vmem:[#allocation8 + $0x3e0] sm:$0xff]
    %v1965 = vld [vmem:[#allocation8 + $0x3e8] sm:$0xff]
    %v1966 = vld [vmem:[#allocation8 + $0x3f0] sm:$0xff]
    %v1967 = vld [vmem:[#allocation8 + $0x3f8] sm:$0xff]
    %v1968 = vld [vmem:[%s4] sm:$0xf]
    %v1969 = vunpack.c.l.bf16 %v1968
    %v1971 = vlaneseq
    %v1972 = vshrl.u32 %v1971, 7
    %v1973 = vsub.s32 0, %v1972
    %v1974 = vrot.slane %v1969, %v1973
    %v1975 = vlaneseq
    %v1976 = vshrl.u32 %v1975, 7
    %v1977 = vsub.s32 2, %v1976
    %v1978 = vrot.slane %v1969, %v1977
    %v1979 = vlaneseq
    %v1980 = vshrl.u32 %v1979, 7
    %v1981 = vsub.s32 4, %v1980
    %v1982 = vrot.slane %v1969, %v1981
    %v1983 = vlaneseq
    %v1984 = vshrl.u32 %v1983, 7
    %v1985 = vsub.s32 6, %v1984
    %v1986 = vrot.slane %v1969, %v1985
    %v1991 = vlaneseq
    %v1992 = vshrl.u32 %v1991, 7
    %v1993 = vsub.s32 0, %v1992
    %v1994 = vrot.slane %v1974, %v1993
    %v1995 = vlaneseq
    %v1996 = vshrl.u32 %v1995, 7
    %v1997 = vsub.s32 0, %v1996
    %v1998 = vrot.slane %v1978, %v1997
    %v1999 = vlaneseq
    %v2000 = vshrl.u32 %v1999, 7
    %v2001 = vsub.s32 0, %v2000
    %v2002 = vrot.slane %v1982, %v2001
    %v2003 = vlaneseq
    %v2004 = vshrl.u32 %v2003, 7
    %v2005 = vsub.s32 0, %v2004
    %v2006 = vrot.slane %v1986, %v2005
    %v2135 = vunpack.c.l.b16 %v1840
    %v2136 = vunpack.c.h.b16 %v1840
    %v2137 = vunpack.c.l.b16 %v1841
    %v2138 = vunpack.c.h.b16 %v1841
    %v2139 = vunpack.c.l.b16 %v1842
    %v2140 = vunpack.c.h.b16 %v1842
    %v2141 = vunpack.c.l.b16 %v1843
    %v2142 = vunpack.c.h.b16 %v1843
    %v2143 = vunpack.c.l.b16 %v1844
    %v2144 = vunpack.c.h.b16 %v1844
    %v2145 = vunpack.c.l.b16 %v1845
    %v2146 = vunpack.c.h.b16 %v1845
    %v2147 = vunpack.c.l.b16 %v1846
    %v2148 = vunpack.c.h.b16 %v1846
    %v2149 = vunpack.c.l.b16 %v1847
    %v2150 = vunpack.c.h.b16 %v1847
    %v2151 = vunpack.c.l.b16 %v1848
    %v2152 = vunpack.c.h.b16 %v1848
    %v2153 = vunpack.c.l.b16 %v1849
    %v2154 = vunpack.c.h.b16 %v1849
    %v2155 = vunpack.c.l.b16 %v1850
    %v2156 = vunpack.c.h.b16 %v1850
    %v2157 = vunpack.c.l.b16 %v1851
    %v2158 = vunpack.c.h.b16 %v1851
    %v2159 = vunpack.c.l.b16 %v1852
    %v2160 = vunpack.c.h.b16 %v1852
    %v2161 = vunpack.c.l.b16 %v1853
    %v2162 = vunpack.c.h.b16 %v1853
    %v2163 = vunpack.c.l.b16 %v1854
    %v2164 = vunpack.c.h.b16 %v1854
    %v2165 = vunpack.c.l.b16 %v1855
    %v2166 = vunpack.c.h.b16 %v1855
    %v2167 = vunpack.c.l.b16 %v1856
    %v2168 = vunpack.c.h.b16 %v1856
    %v2169 = vunpack.c.l.b16 %v1857
    %v2170 = vunpack.c.h.b16 %v1857
    %v2171 = vunpack.c.l.b16 %v1858
    %v2172 = vunpack.c.h.b16 %v1858
    %v2173 = vunpack.c.l.b16 %v1859
    %v2174 = vunpack.c.h.b16 %v1859
    %v2175 = vunpack.c.l.b16 %v1860
    %v2176 = vunpack.c.h.b16 %v1860
    %v2177 = vunpack.c.l.b16 %v1861
    %v2178 = vunpack.c.h.b16 %v1861
    %v2179 = vunpack.c.l.b16 %v1862
    %v2180 = vunpack.c.h.b16 %v1862
    %v2181 = vunpack.c.l.b16 %v1863
    %v2182 = vunpack.c.h.b16 %v1863
    %v2183 = vunpack.c.l.b16 %v1864
    %v2184 = vunpack.c.h.b16 %v1864
    %v2185 = vunpack.c.l.b16 %v1865
    %v2186 = vunpack.c.h.b16 %v1865
    %v2187 = vunpack.c.l.b16 %v1866
    %v2188 = vunpack.c.h.b16 %v1866
    %v2189 = vunpack.c.l.b16 %v1867
    %v2190 = vunpack.c.h.b16 %v1867
    %v2191 = vunpack.c.l.b16 %v1868
    %v2192 = vunpack.c.h.b16 %v1868
    %v2193 = vunpack.c.l.b16 %v1869
    %v2194 = vunpack.c.h.b16 %v1869
    %v2195 = vunpack.c.l.b16 %v1870
    %v2196 = vunpack.c.h.b16 %v1870
    %v2197 = vunpack.c.l.b16 %v1871
    %v2198 = vunpack.c.h.b16 %v1871
    %v2199 = vunpack.c.l.b16 %v1872
    %v2200 = vunpack.c.h.b16 %v1872
    %v2201 = vunpack.c.l.b16 %v1873
    %v2202 = vunpack.c.h.b16 %v1873
    %v2203 = vunpack.c.l.b16 %v1874
    %v2204 = vunpack.c.h.b16 %v1874
    %v2205 = vunpack.c.l.b16 %v1875
    %v2206 = vunpack.c.h.b16 %v1875
    %v2207 = vunpack.c.l.b16 %v1876
    %v2208 = vunpack.c.h.b16 %v1876
    %v2209 = vunpack.c.l.b16 %v1877
    %v2210 = vunpack.c.h.b16 %v1877
    %v2211 = vunpack.c.l.b16 %v1878
    %v2212 = vunpack.c.h.b16 %v1878
    %v2213 = vunpack.c.l.b16 %v1879
    %v2214 = vunpack.c.h.b16 %v1879
    %v2215 = vunpack.c.l.b16 %v1880
    %v2216 = vunpack.c.h.b16 %v1880
    %v2217 = vunpack.c.l.b16 %v1881
    %v2218 = vunpack.c.h.b16 %v1881
    %v2219 = vunpack.c.l.b16 %v1882
    %v2220 = vunpack.c.h.b16 %v1882
    %v2221 = vunpack.c.l.b16 %v1883
    %v2222 = vunpack.c.h.b16 %v1883
    %v2223 = vunpack.c.l.b16 %v1884
    %v2224 = vunpack.c.h.b16 %v1884
    %v2225 = vunpack.c.l.b16 %v1885
    %v2226 = vunpack.c.h.b16 %v1885
    %v2227 = vunpack.c.l.b16 %v1886
    %v2228 = vunpack.c.h.b16 %v1886
    %v2229 = vunpack.c.l.b16 %v1887
    %v2230 = vunpack.c.h.b16 %v1887
    %v2231 = vunpack.c.l.b16 %v1888
    %v2232 = vunpack.c.h.b16 %v1888
    %v2233 = vunpack.c.l.b16 %v1889
    %v2234 = vunpack.c.h.b16 %v1889
    %v2235 = vunpack.c.l.b16 %v1890
    %v2236 = vunpack.c.h.b16 %v1890
    %v2237 = vunpack.c.l.b16 %v1891
    %v2238 = vunpack.c.h.b16 %v1891
    %v2239 = vunpack.c.l.b16 %v1892
    %v2240 = vunpack.c.h.b16 %v1892
    %v2241 = vunpack.c.l.b16 %v1893
    %v2242 = vunpack.c.h.b16 %v1893
    %v2243 = vunpack.c.l.b16 %v1894
    %v2244 = vunpack.c.h.b16 %v1894
    %v2245 = vunpack.c.l.b16 %v1895
    %v2246 = vunpack.c.h.b16 %v1895
    %v2247 = vunpack.c.l.b16 %v1896
    %v2248 = vunpack.c.h.b16 %v1896
    %v2249 = vunpack.c.l.b16 %v1897
    %v2250 = vunpack.c.h.b16 %v1897
    %v2251 = vunpack.c.l.b16 %v1898
    %v2252 = vunpack.c.h.b16 %v1898
    %v2253 = vunpack.c.l.b16 %v1899
    %v2254 = vunpack.c.h.b16 %v1899
    %v2255 = vunpack.c.l.b16 %v1900
    %v2256 = vunpack.c.h.b16 %v1900
    %v2257 = vunpack.c.l.b16 %v1901
    %v2258 = vunpack.c.h.b16 %v1901
    %v2259 = vunpack.c.l.b16 %v1902
    %v2260 = vunpack.c.h.b16 %v1902
    %v2261 = vunpack.c.l.b16 %v1903
    %v2262 = vunpack.c.h.b16 %v1903
    %v2263 = vunpack.c.l.b16 %v1904
    %v2264 = vunpack.c.h.b16 %v1904
    %v2265 = vunpack.c.l.b16 %v1905
    %v2266 = vunpack.c.h.b16 %v1905
    %v2267 = vunpack.c.l.b16 %v1906
    %v2268 = vunpack.c.h.b16 %v1906
    %v2269 = vunpack.c.l.b16 %v1907
    %v2270 = vunpack.c.h.b16 %v1907
    %v2271 = vunpack.c.l.b16 %v1908
    %v2272 = vunpack.c.h.b16 %v1908
    %v2273 = vunpack.c.l.b16 %v1909
    %v2274 = vunpack.c.h.b16 %v1909
    %v2275 = vunpack.c.l.b16 %v1910
    %v2276 = vunpack.c.h.b16 %v1910
    %v2277 = vunpack.c.l.b16 %v1911
    %v2278 = vunpack.c.h.b16 %v1911
    %v2279 = vunpack.c.l.b16 %v1912
    %v2280 = vunpack.c.h.b16 %v1912
    %v2281 = vunpack.c.l.b16 %v1913
    %v2282 = vunpack.c.h.b16 %v1913
    %v2283 = vunpack.c.l.b16 %v1914
    %v2284 = vunpack.c.h.b16 %v1914
    %v2285 = vunpack.c.l.b16 %v1915
    %v2286 = vunpack.c.h.b16 %v1915
    %v2287 = vunpack.c.l.b16 %v1916
    %v2288 = vunpack.c.h.b16 %v1916
    %v2289 = vunpack.c.l.b16 %v1917
    %v2290 = vunpack.c.h.b16 %v1917
    %v2291 = vunpack.c.l.b16 %v1918
    %v2292 = vunpack.c.h.b16 %v1918
    %v2293 = vunpack.c.l.b16 %v1919
    %v2294 = vunpack.c.h.b16 %v1919
    %v2295 = vunpack.c.l.b16 %v1920
    %v2296 = vunpack.c.h.b16 %v1920
    %v2297 = vunpack.c.l.b16 %v1921
    %v2298 = vunpack.c.h.b16 %v1921
    %v2299 = vunpack.c.l.b16 %v1922
    %v2300 = vunpack.c.h.b16 %v1922
    %v2301 = vunpack.c.l.b16 %v1923
    %v2302 = vunpack.c.h.b16 %v1923
    %v2303 = vunpack.c.l.b16 %v1924
    %v2304 = vunpack.c.h.b16 %v1924
    %v2305 = vunpack.c.l.b16 %v1925
    %v2306 = vunpack.c.h.b16 %v1925
    %v2307 = vunpack.c.l.b16 %v1926
    %v2308 = vunpack.c.h.b16 %v1926
    %v2309 = vunpack.c.l.b16 %v1927
    %v2310 = vunpack.c.h.b16 %v1927
    %v2311 = vunpack.c.l.b16 %v1928
    %v2312 = vunpack.c.h.b16 %v1928
    %v2313 = vunpack.c.l.b16 %v1929
    %v2314 = vunpack.c.h.b16 %v1929
    %v2315 = vunpack.c.l.b16 %v1930
    %v2316 = vunpack.c.h.b16 %v1930
    %v2317 = vunpack.c.l.b16 %v1931
    %v2318 = vunpack.c.h.b16 %v1931
    %v2319 = vunpack.c.l.b16 %v1932
    %v2320 = vunpack.c.h.b16 %v1932
    %v2321 = vunpack.c.l.b16 %v1933
    %v2322 = vunpack.c.h.b16 %v1933
    %v2323 = vunpack.c.l.b16 %v1934
    %v2324 = vunpack.c.h.b16 %v1934
    %v2325 = vunpack.c.l.b16 %v1935
    %v2326 = vunpack.c.h.b16 %v1935
    %v2327 = vunpack.c.l.b16 %v1936
    %v2328 = vunpack.c.h.b16 %v1936
    %v2329 = vunpack.c.l.b16 %v1937
    %v2330 = vunpack.c.h.b16 %v1937
    %v2331 = vunpack.c.l.b16 %v1938
    %v2332 = vunpack.c.h.b16 %v1938
    %v2333 = vunpack.c.l.b16 %v1939
    %v2334 = vunpack.c.h.b16 %v1939
    %v2335 = vunpack.c.l.b16 %v1940
    %v2336 = vunpack.c.h.b16 %v1940
    %v2337 = vunpack.c.l.b16 %v1941
    %v2338 = vunpack.c.h.b16 %v1941
    %v2339 = vunpack.c.l.b16 %v1942
    %v2340 = vunpack.c.h.b16 %v1942
    %v2341 = vunpack.c.l.b16 %v1943
    %v2342 = vunpack.c.h.b16 %v1943
    %v2343 = vunpack.c.l.b16 %v1944
    %v2344 = vunpack.c.h.b16 %v1944
    %v2345 = vunpack.c.l.b16 %v1945
    %v2346 = vunpack.c.h.b16 %v1945
    %v2347 = vunpack.c.l.b16 %v1946
    %v2348 = vunpack.c.h.b16 %v1946
    %v2349 = vunpack.c.l.b16 %v1947
    %v2350 = vunpack.c.h.b16 %v1947
    %v2351 = vunpack.c.l.b16 %v1948
    %v2352 = vunpack.c.h.b16 %v1948
    %v2353 = vunpack.c.l.b16 %v1949
    %v2354 = vunpack.c.h.b16 %v1949
    %v2355 = vunpack.c.l.b16 %v1950
    %v2356 = vunpack.c.h.b16 %v1950
    %v2357 = vunpack.c.l.b16 %v1951
    %v2358 = vunpack.c.h.b16 %v1951
    %v2359 = vunpack.c.l.b16 %v1952
    %v2360 = vunpack.c.h.b16 %v1952
    %v2361 = vunpack.c.l.b16 %v1953
    %v2362 = vunpack.c.h.b16 %v1953
    %v2363 = vunpack.c.l.b16 %v1954
    %v2364 = vunpack.c.h.b16 %v1954
    %v2365 = vunpack.c.l.b16 %v1955
    %v2366 = vunpack.c.h.b16 %v1955
    %v2367 = vunpack.c.l.b16 %v1956
    %v2368 = vunpack.c.h.b16 %v1956
    %v2369 = vunpack.c.l.b16 %v1957
    %v2370 = vunpack.c.h.b16 %v1957
    %v2371 = vunpack.c.l.b16 %v1958
    %v2372 = vunpack.c.h.b16 %v1958
    %v2373 = vunpack.c.l.b16 %v1959
    %v2374 = vunpack.c.h.b16 %v1959
    %v2375 = vunpack.c.l.b16 %v1960
    %v2376 = vunpack.c.h.b16 %v1960
    %v2377 = vunpack.c.l.b16 %v1961
    %v2378 = vunpack.c.h.b16 %v1961
    %v2379 = vunpack.c.l.b16 %v1962
    %v2380 = vunpack.c.h.b16 %v1962
    %v2381 = vunpack.c.l.b16 %v1963
    %v2382 = vunpack.c.h.b16 %v1963
    %v2383 = vunpack.c.l.b16 %v1964
    %v2384 = vunpack.c.h.b16 %v1964
    %v2385 = vunpack.c.l.b16 %v1965
    %v2386 = vunpack.c.h.b16 %v1965
    %v2387 = vunpack.c.l.b16 %v1966
    %v2388 = vunpack.c.h.b16 %v1966
    %v2389 = vunpack.c.l.b16 %v1967
    %v2390 = vunpack.c.h.b16 %v1967
    %v2391 = vpack.c.b16 %v2139, %v2135
    %v2392 = vpack.c.b16 %v2140, %v2136
    %v2393 = vpack.c.b16 %v2141, %v2137
    %v2394 = vpack.c.b16 %v2142, %v2138
    %v2395 = vpack.c.b16 %v2147, %v2143
    %v2396 = vpack.c.b16 %v2148, %v2144
    %v2397 = vpack.c.b16 %v2149, %v2145
    %v2398 = vpack.c.b16 %v2150, %v2146
    %v2399 = vpack.c.b16 %v2155, %v2151
    %v2400 = vpack.c.b16 %v2156, %v2152
    %v2401 = vpack.c.b16 %v2157, %v2153
    %v2402 = vpack.c.b16 %v2158, %v2154
    %v2403 = vpack.c.b16 %v2163, %v2159
    %v2404 = vpack.c.b16 %v2164, %v2160
    %v2405 = vpack.c.b16 %v2165, %v2161
    %v2406 = vpack.c.b16 %v2166, %v2162
    %v2407 = vpack.c.b16 %v2171, %v2167
    %v2408 = vpack.c.b16 %v2172, %v2168
    %v2409 = vpack.c.b16 %v2173, %v2169
    %v2410 = vpack.c.b16 %v2174, %v2170
    %v2411 = vpack.c.b16 %v2179, %v2175
    %v2412 = vpack.c.b16 %v2180, %v2176
    %v2413 = vpack.c.b16 %v2181, %v2177
    %v2414 = vpack.c.b16 %v2182, %v2178
    %v2415 = vpack.c.b16 %v2187, %v2183
    %v2416 = vpack.c.b16 %v2188, %v2184
    %v2417 = vpack.c.b16 %v2189, %v2185
    %v2418 = vpack.c.b16 %v2190, %v2186
    %v2419 = vpack.c.b16 %v2195, %v2191
    %v2420 = vpack.c.b16 %v2196, %v2192
    %v2421 = vpack.c.b16 %v2197, %v2193
    %v2422 = vpack.c.b16 %v2198, %v2194
    %v2423 = vpack.c.b16 %v2203, %v2199
    %v2424 = vpack.c.b16 %v2204, %v2200
    %v2425 = vpack.c.b16 %v2205, %v2201
    %v2426 = vpack.c.b16 %v2206, %v2202
    %v2427 = vpack.c.b16 %v2211, %v2207
    %v2428 = vpack.c.b16 %v2212, %v2208
    %v2429 = vpack.c.b16 %v2213, %v2209
    %v2430 = vpack.c.b16 %v2214, %v2210
    %v2431 = vpack.c.b16 %v2219, %v2215
    %v2432 = vpack.c.b16 %v2220, %v2216
    %v2433 = vpack.c.b16 %v2221, %v2217
    %v2434 = vpack.c.b16 %v2222, %v2218
    %v2435 = vpack.c.b16 %v2227, %v2223
    %v2436 = vpack.c.b16 %v2228, %v2224
    %v2437 = vpack.c.b16 %v2229, %v2225
    %v2438 = vpack.c.b16 %v2230, %v2226
    %v2439 = vpack.c.b16 %v2235, %v2231
    %v2440 = vpack.c.b16 %v2236, %v2232
    %v2441 = vpack.c.b16 %v2237, %v2233
    %v2442 = vpack.c.b16 %v2238, %v2234
    %v2443 = vpack.c.b16 %v2243, %v2239
    %v2444 = vpack.c.b16 %v2244, %v2240
    %v2445 = vpack.c.b16 %v2245, %v2241
    %v2446 = vpack.c.b16 %v2246, %v2242
    %v2447 = vpack.c.b16 %v2251, %v2247
    %v2448 = vpack.c.b16 %v2252, %v2248
    %v2449 = vpack.c.b16 %v2253, %v2249
    %v2450 = vpack.c.b16 %v2254, %v2250
    %v2451 = vpack.c.b16 %v2259, %v2255
    %v2452 = vpack.c.b16 %v2260, %v2256
    %v2453 = vpack.c.b16 %v2261, %v2257
    %v2454 = vpack.c.b16 %v2262, %v2258
    %v2455 = vpack.c.b16 %v2267, %v2263
    %v2456 = vpack.c.b16 %v2268, %v2264
    %v2457 = vpack.c.b16 %v2269, %v2265
    %v2458 = vpack.c.b16 %v2270, %v2266
    %v2459 = vpack.c.b16 %v2275, %v2271
    %v2460 = vpack.c.b16 %v2276, %v2272
    %v2461 = vpack.c.b16 %v2277, %v2273
    %v2462 = vpack.c.b16 %v2278, %v2274
    %v2463 = vpack.c.b16 %v2283, %v2279
    %v2464 = vpack.c.b16 %v2284, %v2280
    %v2465 = vpack.c.b16 %v2285, %v2281
    %v2466 = vpack.c.b16 %v2286, %v2282
    %v2467 = vpack.c.b16 %v2291, %v2287
    %v2468 = vpack.c.b16 %v2292, %v2288
    %v2469 = vpack.c.b16 %v2293, %v2289
    %v2470 = vpack.c.b16 %v2294, %v2290
    %v2471 = vpack.c.b16 %v2299, %v2295
    %v2472 = vpack.c.b16 %v2300, %v2296
    %v2473 = vpack.c.b16 %v2301, %v2297
    %v2474 = vpack.c.b16 %v2302, %v2298
    %v2475 = vpack.c.b16 %v2307, %v2303
    %v2476 = vpack.c.b16 %v2308, %v2304
    %v2477 = vpack.c.b16 %v2309, %v2305
    %v2478 = vpack.c.b16 %v2310, %v2306
    %v2479 = vpack.c.b16 %v2315, %v2311
    %v2480 = vpack.c.b16 %v2316, %v2312
    %v2481 = vpack.c.b16 %v2317, %v2313
    %v2482 = vpack.c.b16 %v2318, %v2314
    %v2483 = vpack.c.b16 %v2323, %v2319
    %v2484 = vpack.c.b16 %v2324, %v2320
    %v2485 = vpack.c.b16 %v2325, %v2321
    %v2486 = vpack.c.b16 %v2326, %v2322
    %v2487 = vpack.c.b16 %v2331, %v2327
    %v2488 = vpack.c.b16 %v2332, %v2328
    %v2489 = vpack.c.b16 %v2333, %v2329
    %v2490 = vpack.c.b16 %v2334, %v2330
    %v2491 = vpack.c.b16 %v2339, %v2335
    %v2492 = vpack.c.b16 %v2340, %v2336
    %v2493 = vpack.c.b16 %v2341, %v2337
    %v2494 = vpack.c.b16 %v2342, %v2338
    %v2495 = vpack.c.b16 %v2347, %v2343
    %v2496 = vpack.c.b16 %v2348, %v2344
    %v2497 = vpack.c.b16 %v2349, %v2345
    %v2498 = vpack.c.b16 %v2350, %v2346
    %v2499 = vpack.c.b16 %v2355, %v2351
    %v2500 = vpack.c.b16 %v2356, %v2352
    %v2501 = vpack.c.b16 %v2357, %v2353
    %v2502 = vpack.c.b16 %v2358, %v2354
    %v2503 = vpack.c.b16 %v2363, %v2359
    %v2504 = vpack.c.b16 %v2364, %v2360
    %v2505 = vpack.c.b16 %v2365, %v2361
    %v2506 = vpack.c.b16 %v2366, %v2362
    %v2507 = vpack.c.b16 %v2371, %v2367
    %v2508 = vpack.c.b16 %v2372, %v2368
    %v2509 = vpack.c.b16 %v2373, %v2369
    %v2510 = vpack.c.b16 %v2374, %v2370
    %v2511 = vpack.c.b16 %v2379, %v2375
    %v2512 = vpack.c.b16 %v2380, %v2376
    %v2513 = vpack.c.b16 %v2381, %v2377
    %v2514 = vpack.c.b16 %v2382, %v2378
    %v2515 = vpack.c.b16 %v2387, %v2383
    %v2516 = vpack.c.b16 %v2388, %v2384
    %v2517 = vpack.c.b16 %v2389, %v2385
    %v2518 = vpack.c.b16 %v2390, %v2386
    %2647 = vmatprep.subr.bf16.mxu0 %v2420
    %2648 = vmatpush1.bf16.msra.mxu0 %v2419
    %2649 = vmatprep.subr.bf16.mxu0 %v2416
    %2650 = vmatpush1.bf16.msra.mxu0 %v2415
    %2651 = vmatprep.subr.bf16.mxu0 %v2412
    %2652 = vmatpush1.bf16.msra.mxu0 %v2411
    %2653 = vmatprep.subr.bf16.mxu0 %v2408
    %2654 = vmatpush1.bf16.msra.mxu0 %v2407
    %2655 = vmatprep.subr.bf16.mxu0 %v2404
    %2656 = vmatpush1.bf16.msra.mxu0 %v2403
    %2657 = vmatprep.subr.bf16.mxu0 %v2400
    %2658 = vmatpush1.bf16.msra.mxu0 %v2399
    %2659 = vmatprep.subr.bf16.mxu0 %v2396
    %2660 = vmatpush1.bf16.msra.mxu0 %v2395
    %2661 = vmatprep.subr.bf16.mxu0 %v2392
    %2662 = vmatpush1.bf16.msra.mxu0 %v2391
    %2663 = vmatprep.subr.bf16.mxu0 %v2452
    %2664 = vmatpush2.bf16.msra.mxu0 %v2451
    %2665 = vmatprep.subr.bf16.mxu0 %v2448
    %2666 = vmatpush2.bf16.msra.mxu0 %v2447
    %2667 = vmatprep.subr.bf16.mxu0 %v2444
    %2668 = vmatpush2.bf16.msra.mxu0 %v2443
    %2669 = vmatprep.subr.bf16.mxu0 %v2440
    %2670 = vmatpush2.bf16.msra.mxu0 %v2439
    %2671 = vmatprep.subr.bf16.mxu0 %v2436
    %2672 = vmatpush2.bf16.msra.mxu0 %v2435
    %2673 = vmatprep.subr.bf16.mxu0 %v2432
    %2674 = vmatpush2.bf16.msra.mxu0 %v2431
    %2675 = vmatprep.subr.bf16.mxu0 %v2428
    %2676 = vmatpush2.bf16.msra.mxu0 %v2427
    %2677 = vmatprep.subr.bf16.mxu0 %v2424
    %2678 = vmatpush2.bf16.msra.mxu0 %v2423
    %2679 = vmatprep.mubr.bf16.mxu0 %v1837
    %2680 = vmatmul.mubr.bf16.gmra.mxu0 %v1836
    %v2681 = vpop.f32.mrf.mxu0
    %v2682 = vadd.f32 %v1994, %v2681
    %v2683 = vpop.f32.mrf.mxu0
    %v2684 = vadd.f32 %v1998, %v2683
    %v2685 = vpop.f32.mrf.mxu0
    %v2686 = vpop.f32.mrf.mxu0
    %2687 = vdwg.mxu0
    %2688 = vmatprep.subr.bf16.mxu0 %v2484
    %2689 = vmatpush1.bf16.msra.mxu0 %v2483
    %2690 = vmatprep.subr.bf16.mxu0 %v2480
    %2691 = vmatpush1.bf16.msra.mxu0 %v2479
    %2692 = vmatprep.subr.bf16.mxu0 %v2476
    %2693 = vmatpush1.bf16.msra.mxu0 %v2475
    %2694 = vmatprep.subr.bf16.mxu0 %v2472
    %2695 = vmatpush1.bf16.msra.mxu0 %v2471
    %2696 = vmatprep.subr.bf16.mxu0 %v2468
    %2697 = vmatpush1.bf16.msra.mxu0 %v2467
    %2698 = vmatprep.subr.bf16.mxu0 %v2464
    %2699 = vmatpush1.bf16.msra.mxu0 %v2463
    %2700 = vmatprep.subr.bf16.mxu0 %v2460
    %2701 = vmatpush1.bf16.msra.mxu0 %v2459
    %2702 = vmatprep.subr.bf16.mxu0 %v2456
    %2703 = vmatpush1.bf16.msra.mxu0 %v2455
    %2704 = vmatprep.subr.bf16.mxu0 %v2516
    %2705 = vmatpush2.bf16.msra.mxu0 %v2515
    %2706 = vmatprep.subr.bf16.mxu0 %v2512
    %2707 = vmatpush2.bf16.msra.mxu0 %v2511
    %2708 = vmatprep.subr.bf16.mxu0 %v2508
    %2709 = vmatpush2.bf16.msra.mxu0 %v2507
    %2710 = vmatprep.subr.bf16.mxu0 %v2504
    %2711 = vmatpush2.bf16.msra.mxu0 %v2503
    %2712 = vmatprep.subr.bf16.mxu0 %v2500
    %2713 = vmatpush2.bf16.msra.mxu0 %v2499
    %2714 = vmatprep.subr.bf16.mxu0 %v2496
    %2715 = vmatpush2.bf16.msra.mxu0 %v2495
    %2716 = vmatprep.subr.bf16.mxu0 %v2492
    %2717 = vmatpush2.bf16.msra.mxu0 %v2491
    %2718 = vmatprep.subr.bf16.mxu0 %v2488
    %2719 = vmatpush2.bf16.msra.mxu0 %v2487
    %2720 = vmatprep.mubr.bf16.mxu0 %v1839
    %2721 = vmatmul.mubr.bf16.gmra.mxu0 %v1838
    %v2722 = vpop.f32.mrf.mxu0
    %v2723 = vadd.f32 %v2682, %v2722
    %v2724 = vpop.f32.mrf.mxu0
    %v2725 = vadd.f32 %v2684, %v2724
    %v2726 = vpop.f32.mrf.mxu0
    %v2727 = vpop.f32.mrf.mxu0
    %2728 = vdwg.mxu0
    %2729 = vmatprep.subr.bf16.mxu0 %v2422
    %2730 = vmatpush1.bf16.msra.mxu0 %v2421
    %2731 = vmatprep.subr.bf16.mxu0 %v2418
    %2732 = vmatpush1.bf16.msra.mxu0 %v2417
    %2733 = vmatprep.subr.bf16.mxu0 %v2414
    %2734 = vmatpush1.bf16.msra.mxu0 %v2413
    %2735 = vmatprep.subr.bf16.mxu0 %v2410
    %2736 = vmatpush1.bf16.msra.mxu0 %v2409
    %2737 = vmatprep.subr.bf16.mxu0 %v2406
    %2738 = vmatpush1.bf16.msra.mxu0 %v2405
    %2739 = vmatprep.subr.bf16.mxu0 %v2402
    %2740 = vmatpush1.bf16.msra.mxu0 %v2401
    %2741 = vmatprep.subr.bf16.mxu0 %v2398
    %2742 = vmatpush1.bf16.msra.mxu0 %v2397
    %2743 = vmatprep.subr.bf16.mxu0 %v2394
    %2744 = vmatpush1.bf16.msra.mxu0 %v2393
    %2745 = vmatprep.subr.bf16.mxu0 %v2454
    %2746 = vmatpush2.bf16.msra.mxu0 %v2453
    %2747 = vmatprep.subr.bf16.mxu0 %v2450
    %2748 = vmatpush2.bf16.msra.mxu0 %v2449
    %2749 = vmatprep.subr.bf16.mxu0 %v2446
    %2750 = vmatpush2.bf16.msra.mxu0 %v2445
    %2751 = vmatprep.subr.bf16.mxu0 %v2442
    %2752 = vmatpush2.bf16.msra.mxu0 %v2441
    %2753 = vmatprep.subr.bf16.mxu0 %v2438
    %2754 = vmatpush2.bf16.msra.mxu0 %v2437
    %2755 = vmatprep.subr.bf16.mxu0 %v2434
    %2756 = vmatpush2.bf16.msra.mxu0 %v2433
    %2757 = vmatprep.subr.bf16.mxu0 %v2430
    %2758 = vmatpush2.bf16.msra.mxu0 %v2429
    %2759 = vmatprep.subr.bf16.mxu0 %v2426
    %2760 = vmatpush2.bf16.msra.mxu0 %v2425
    %2761 = vmatprep.mubr.bf16.mxu0 %v1837
    %2762 = vmatmul.mubr.bf16.gmra.mxu0 %v1836
    %v2763 = vpop.f32.mrf.mxu0
    %v2764 = vadd.f32 %v2002, %v2763
    %v2765 = vpop.f32.mrf.mxu0
    %v2766 = vadd.f32 %v2006, %v2765
    %v2767 = vpop.f32.mrf.mxu0
    %v2768 = vpop.f32.mrf.mxu0
    %2769 = vdwg.mxu0
    %2770 = vmatprep.subr.bf16.mxu0 %v2486
    %2771 = vmatpush1.bf16.msra.mxu0 %v2485
    %2772 = vmatprep.subr.bf16.mxu0 %v2482
    %2773 = vmatpush1.bf16.msra.mxu0 %v2481
    %2774 = vmatprep.subr.bf16.mxu0 %v2478
    %2775 = vmatpush1.bf16.msra.mxu0 %v2477
    %2776 = vmatprep.subr.bf16.mxu0 %v2474
    %2777 = vmatpush1.bf16.msra.mxu0 %v2473
    %2778 = vmatprep.subr.bf16.mxu0 %v2470
    %2779 = vmatpush1.bf16.msra.mxu0 %v2469
    %2780 = vmatprep.subr.bf16.mxu0 %v2466
    %2781 = vmatpush1.bf16.msra.mxu0 %v2465
    %2782 = vmatprep.subr.bf16.mxu0 %v2462
    %2783 = vmatpush1.bf16.msra.mxu0 %v2461
    %2784 = vmatprep.subr.bf16.mxu0 %v2458
    %2785 = vmatpush1.bf16.msra.mxu0 %v2457
    %2786 = vmatprep.subr.bf16.mxu0 %v2518
    %2787 = vmatpush2.bf16.msra.mxu0 %v2517
    %2788 = vmatprep.subr.bf16.mxu0 %v2514
    %2789 = vmatpush2.bf16.msra.mxu0 %v2513
    %2790 = vmatprep.subr.bf16.mxu0 %v2510
    %2791 = vmatpush2.bf16.msra.mxu0 %v2509
    %2792 = vmatprep.subr.bf16.mxu0 %v2506
    %2793 = vmatpush2.bf16.msra.mxu0 %v2505
    %2794 = vmatprep.subr.bf16.mxu0 %v2502
    %2795 = vmatpush2.bf16.msra.mxu0 %v2501
    %2796 = vmatprep.subr.bf16.mxu0 %v2498
    %2797 = vmatpush2.bf16.msra.mxu0 %v2497
    %2798 = vmatprep.subr.bf16.mxu0 %v2494
    %2799 = vmatpush2.bf16.msra.mxu0 %v2493
    %2800 = vmatprep.subr.bf16.mxu0 %v2490
    %2801 = vmatpush2.bf16.msra.mxu0 %v2489
    %2802 = vmatprep.mubr.bf16.mxu0 %v1839
    %2803 = vmatmul.mubr.bf16.gmra.mxu0 %v1838
    %v2804 = vpop.f32.mrf.mxu0
    %v2805 = vadd.f32 %v2764, %v2804
    %v2806 = vpop.f32.mrf.mxu0
    %v2807 = vadd.f32 %v2766, %v2806
    %v2808 = vpop.f32.mrf.mxu0
    %v2809 = vpop.f32.mrf.mxu0
    %2810 = vdwg.mxu0
    %v2811 = vmax.f32 %v2723, 0.0
    %v2812 = vmax.f32 %v2725, 0.0
    %v2813 = vmax.f32 %v2805, 0.0
    %v2814 = vmax.f32 %v2807, 0.0
    %v2815 = vpack.c.bf16 %v2811, %v2811
    %v2816 = vpack.c.bf16 %v2812, %v2812
    %v2817 = vpack.c.bf16 %v2813, %v2813
    %v2818 = vpack.c.bf16 %v2814, %v2814
    %v2819 = vld [vmem:[#allocation10] sm:$0xf]
    %v2820 = vld [vmem:[#allocation10 + $0x4] sm:$0xf]
    %v2821 = vld [vmem:[#allocation10 + $0x8] sm:$0xf]
    %v2822 = vld [vmem:[#allocation10 + $0xc] sm:$0xf]
    %v2823 = vld [vmem:[#allocation10 + $0x10] sm:$0xf]
    %v2824 = vld [vmem:[#allocation10 + $0x14] sm:$0xf]
    %v2825 = vld [vmem:[#allocation10 + $0x18] sm:$0xf]
    %v2826 = vld [vmem:[#allocation10 + $0x1c] sm:$0xf]
    %v2827 = vld [vmem:[#allocation10 + $0x20] sm:$0xf]
    %v2828 = vld [vmem:[#allocation10 + $0x24] sm:$0xf]
    %v2829 = vld [vmem:[#allocation10 + $0x28] sm:$0xf]
    %v2830 = vld [vmem:[#allocation10 + $0x2c] sm:$0xf]
    %v2831 = vld [vmem:[#allocation10 + $0x30] sm:$0xf]
    %v2832 = vld [vmem:[#allocation10 + $0x34] sm:$0xf]
    %v2833 = vld [vmem:[#allocation10 + $0x38] sm:$0xf]
    %v2834 = vld [vmem:[#allocation10 + $0x3c] sm:$0xf]
    %v2835 = vld [vmem:[#allocation10 + $0x40] sm:$0xf]
    %v2836 = vld [vmem:[#allocation10 + $0x44] sm:$0xf]
    %v2837 = vld [vmem:[#allocation10 + $0x48] sm:$0xf]
    %v2838 = vld [vmem:[#allocation10 + $0x4c] sm:$0xf]
    %v2839 = vld [vmem:[#allocation10 + $0x50] sm:$0xf]
    %v2840 = vld [vmem:[#allocation10 + $0x54] sm:$0xf]
    %v2841 = vld [vmem:[#allocation10 + $0x58] sm:$0xf]
    %v2842 = vld [vmem:[#allocation10 + $0x5c] sm:$0xf]
    %v2843 = vld [vmem:[#allocation10 + $0x60] sm:$0xf]
    %v2844 = vld [vmem:[#allocation10 + $0x64] sm:$0xf]
    %v2845 = vld [vmem:[#allocation10 + $0x68] sm:$0xf]
    %v2846 = vld [vmem:[#allocation10 + $0x6c] sm:$0xf]
    %v2847 = vld [vmem:[#allocation10 + $0x70] sm:$0xf]
    %v2848 = vld [vmem:[#allocation10 + $0x74] sm:$0xf]
    %v2849 = vld [vmem:[#allocation10 + $0x78] sm:$0xf]
    %v2850 = vld [vmem:[#allocation10 + $0x7c] sm:$0xf]
    %v2851 = vld [vmem:[#allocation10 + $0x80] sm:$0xf]
    %v2852 = vld [vmem:[#allocation10 + $0x84] sm:$0xf]
    %v2853 = vld [vmem:[#allocation10 + $0x88] sm:$0xf]
    %v2854 = vld [vmem:[#allocation10 + $0x8c] sm:$0xf]
    %v2855 = vld [vmem:[#allocation10 + $0x90] sm:$0xf]
    %v2856 = vld [vmem:[#allocation10 + $0x94] sm:$0xf]
    %v2857 = vld [vmem:[#allocation10 + $0x98] sm:$0xf]
    %v2858 = vld [vmem:[#allocation10 + $0x9c] sm:$0xf]
    %v2859 = vld [vmem:[#allocation10 + $0xa0] sm:$0xf]
    %v2860 = vld [vmem:[#allocation10 + $0xa4] sm:$0xf]
    %v2861 = vld [vmem:[#allocation10 + $0xa8] sm:$0xf]
    %v2862 = vld [vmem:[#allocation10 + $0xac] sm:$0xf]
    %v2863 = vld [vmem:[#allocation10 + $0xb0] sm:$0xf]
    %v2864 = vld [vmem:[#allocation10 + $0xb4] sm:$0xf]
    %v2865 = vld [vmem:[#allocation10 + $0xb8] sm:$0xf]
    %v2866 = vld [vmem:[#allocation10 + $0xbc] sm:$0xf]
    %v2867 = vld [vmem:[#allocation10 + $0xc0] sm:$0xf]
    %v2868 = vld [vmem:[#allocation10 + $0xc4] sm:$0xf]
    %v2869 = vld [vmem:[#allocation10 + $0xc8] sm:$0xf]
    %v2870 = vld [vmem:[#allocation10 + $0xcc] sm:$0xf]
    %v2871 = vld [vmem:[#allocation10 + $0xd0] sm:$0xf]
    %v2872 = vld [vmem:[#allocation10 + $0xd4] sm:$0xf]
    %v2873 = vld [vmem:[#allocation10 + $0xd8] sm:$0xf]
    %v2874 = vld [vmem:[#allocation10 + $0xdc] sm:$0xf]
    %v2875 = vld [vmem:[#allocation10 + $0xe0] sm:$0xf]
    %v2876 = vld [vmem:[#allocation10 + $0xe4] sm:$0xf]
    %v2877 = vld [vmem:[#allocation10 + $0xe8] sm:$0xf]
    %v2878 = vld [vmem:[#allocation10 + $0xec] sm:$0xf]
    %v2879 = vld [vmem:[#allocation10 + $0xf0] sm:$0xf]
    %v2880 = vld [vmem:[#allocation10 + $0xf4] sm:$0xf]
    %v2881 = vld [vmem:[#allocation10 + $0xf8] sm:$0xf]
    %v2882 = vld [vmem:[#allocation10 + $0xfc] sm:$0xf]
    %v2883 = vld [vmem:[%s6] sm:$0x1]
    %v2884 = vunpack.c.l.bf16 %v2883
    %v2885 = vlaneseq
    %v2886 = vshrl.u32 %v2885, 7
    %v2887 = vsub.s32 0, %v2886
    %v2888 = vrot.slane %v2884, %v2887
    %v2953 = vunpack.c.l.b16 %v2819
    %v2954 = vunpack.c.l.b16 %v2820
    %v2955 = vunpack.c.l.b16 %v2821
    %v2956 = vunpack.c.l.b16 %v2822
    %v2957 = vunpack.c.l.b16 %v2823
    %v2958 = vunpack.c.l.b16 %v2824
    %v2959 = vunpack.c.l.b16 %v2825
    %v2960 = vunpack.c.l.b16 %v2826
    %v2961 = vunpack.c.l.b16 %v2827
    %v2962 = vunpack.c.l.b16 %v2828
    %v2963 = vunpack.c.l.b16 %v2829
    %v2964 = vunpack.c.l.b16 %v2830
    %v2965 = vunpack.c.l.b16 %v2831
    %v2966 = vunpack.c.l.b16 %v2832
    %v2967 = vunpack.c.l.b16 %v2833
    %v2968 = vunpack.c.l.b16 %v2834
    %v2969 = vunpack.c.l.b16 %v2835
    %v2970 = vunpack.c.l.b16 %v2836
    %v2971 = vunpack.c.l.b16 %v2837
    %v2972 = vunpack.c.l.b16 %v2838
    %v2973 = vunpack.c.l.b16 %v2839
    %v2974 = vunpack.c.l.b16 %v2840
    %v2975 = vunpack.c.l.b16 %v2841
    %v2976 = vunpack.c.l.b16 %v2842
    %v2977 = vunpack.c.l.b16 %v2843
    %v2978 = vunpack.c.l.b16 %v2844
    %v2979 = vunpack.c.l.b16 %v2845
    %v2980 = vunpack.c.l.b16 %v2846
    %v2981 = vunpack.c.l.b16 %v2847
    %v2982 = vunpack.c.l.b16 %v2848
    %v2983 = vunpack.c.l.b16 %v2849
    %v2984 = vunpack.c.l.b16 %v2850
    %v2985 = vunpack.c.l.b16 %v2851
    %v2986 = vunpack.c.l.b16 %v2852
    %v2987 = vunpack.c.l.b16 %v2853
    %v2988 = vunpack.c.l.b16 %v2854
    %v2989 = vunpack.c.l.b16 %v2855
    %v2990 = vunpack.c.l.b16 %v2856
    %v2991 = vunpack.c.l.b16 %v2857
    %v2992 = vunpack.c.l.b16 %v2858
    %v2993 = vunpack.c.l.b16 %v2859
    %v2994 = vunpack.c.l.b16 %v2860
    %v2995 = vunpack.c.l.b16 %v2861
    %v2996 = vunpack.c.l.b16 %v2862
    %v2997 = vunpack.c.l.b16 %v2863
    %v2998 = vunpack.c.l.b16 %v2864
    %v2999 = vunpack.c.l.b16 %v2865
    %v3000 = vunpack.c.l.b16 %v2866
    %v3001 = vunpack.c.l.b16 %v2867
    %v3002 = vunpack.c.l.b16 %v2868
    %v3003 = vunpack.c.l.b16 %v2869
    %v3004 = vunpack.c.l.b16 %v2870
    %v3005 = vunpack.c.l.b16 %v2871
    %v3006 = vunpack.c.l.b16 %v2872
    %v3007 = vunpack.c.l.b16 %v2873
    %v3008 = vunpack.c.l.b16 %v2874
    %v3009 = vunpack.c.l.b16 %v2875
    %v3010 = vunpack.c.l.b16 %v2876
    %v3011 = vunpack.c.l.b16 %v2877
    %v3012 = vunpack.c.l.b16 %v2878
    %v3013 = vunpack.c.l.b16 %v2879
    %v3014 = vunpack.c.l.b16 %v2880
    %v3015 = vunpack.c.l.b16 %v2881
    %v3016 = vunpack.c.l.b16 %v2882
    %v3017 = vpack.c.b16 %v2954, %v2953
    %v3018 = vpack.c.b16 %v2956, %v2955
    %v3019 = vpack.c.b16 %v2958, %v2957
    %v3020 = vpack.c.b16 %v2960, %v2959
    %v3021 = vpack.c.b16 %v2962, %v2961
    %v3022 = vpack.c.b16 %v2964, %v2963
    %v3023 = vpack.c.b16 %v2966, %v2965
    %v3024 = vpack.c.b16 %v2968, %v2967
    %v3025 = vpack.c.b16 %v2970, %v2969
    %v3026 = vpack.c.b16 %v2972, %v2971
    %v3027 = vpack.c.b16 %v2974, %v2973
    %v3028 = vpack.c.b16 %v2976, %v2975
    %v3029 = vpack.c.b16 %v2978, %v2977
    %v3030 = vpack.c.b16 %v2980, %v2979
    %v3031 = vpack.c.b16 %v2982, %v2981
    %v3032 = vpack.c.b16 %v2984, %v2983
    %v3033 = vpack.c.b16 %v2986, %v2985
    %v3034 = vpack.c.b16 %v2988, %v2987
    %v3035 = vpack.c.b16 %v2990, %v2989
    %v3036 = vpack.c.b16 %v2992, %v2991
    %v3037 = vpack.c.b16 %v2994, %v2993
    %v3038 = vpack.c.b16 %v2996, %v2995
    %v3039 = vpack.c.b16 %v2998, %v2997
    %v3040 = vpack.c.b16 %v3000, %v2999
    %v3041 = vpack.c.b16 %v3002, %v3001
    %v3042 = vpack.c.b16 %v3004, %v3003
    %v3043 = vpack.c.b16 %v3006, %v3005
    %v3044 = vpack.c.b16 %v3008, %v3007
    %v3045 = vpack.c.b16 %v3010, %v3009
    %v3046 = vpack.c.b16 %v3012, %v3011
    %v3047 = vpack.c.b16 %v3014, %v3013
    %v3048 = vpack.c.b16 %v3016, %v3015
    %3081 = vmatprep.subr.bf16.mxu0 0
    %3082 = vmatpush1.bf16.msra.mxu0 %v3024
    %3083 = vmatprep.subr.bf16.mxu0 0
    %3084 = vmatpush1.bf16.msra.mxu0 %v3023
    %3085 = vmatprep.subr.bf16.mxu0 0
    %3086 = vmatpush1.bf16.msra.mxu0 %v3022
    %3087 = vmatprep.subr.bf16.mxu0 0
    %3088 = vmatpush1.bf16.msra.mxu0 %v3021
    %3089 = vmatprep.subr.bf16.mxu0 0
    %3090 = vmatpush1.bf16.msra.mxu0 %v3020
    %3091 = vmatprep.subr.bf16.mxu0 0
    %3092 = vmatpush1.bf16.msra.mxu0 %v3019
    %3093 = vmatprep.subr.bf16.mxu0 0
    %3094 = vmatpush1.bf16.msra.mxu0 %v3018
    %3095 = vmatprep.subr.bf16.mxu0 0
    %3096 = vmatpush1.bf16.msra.mxu0 %v3017
    %3097 = vmatprep.subr.bf16.mxu0 0
    %3098 = vmatpush2.bf16.msra.mxu0 %v3032
    %3099 = vmatprep.subr.bf16.mxu0 0
    %3100 = vmatpush2.bf16.msra.mxu0 %v3031
    %3101 = vmatprep.subr.bf16.mxu0 0
    %3102 = vmatpush2.bf16.msra.mxu0 %v3030
    %3103 = vmatprep.subr.bf16.mxu0 0
    %3104 = vmatpush2.bf16.msra.mxu0 %v3029
    %3105 = vmatprep.subr.bf16.mxu0 0
    %3106 = vmatpush2.bf16.msra.mxu0 %v3028
    %3107 = vmatprep.subr.bf16.mxu0 0
    %3108 = vmatpush2.bf16.msra.mxu0 %v3027
    %3109 = vmatprep.subr.bf16.mxu0 0
    %3110 = vmatpush2.bf16.msra.mxu0 %v3026
    %3111 = vmatprep.subr.bf16.mxu0 0
    %3112 = vmatpush2.bf16.msra.mxu0 %v3025
    %3113 = vmatprep.mubr.bf16.mxu0 %v2816
    %3114 = vmatmul.mubr.bf16.gmra.mxu0 %v2815
    %v3115 = vpop.f32.mrf.mxu0
    %v3116 = vadd.f32 %v2888, %v3115
    %v3117 = vpop.f32.mrf.mxu0
    %v3118 = vpop.f32.mrf.mxu0
    %v3119 = vpop.f32.mrf.mxu0
    %3120 = vdwg.mxu0
    %3121 = vmatprep.subr.bf16.mxu0 0
    %3122 = vmatpush1.bf16.msra.mxu0 %v3040
    %3123 = vmatprep.subr.bf16.mxu0 0
    %3124 = vmatpush1.bf16.msra.mxu0 %v3039
    %3125 = vmatprep.subr.bf16.mxu0 0
    %3126 = vmatpush1.bf16.msra.mxu0 %v3038
    %3127 = vmatprep.subr.bf16.mxu0 0
    %3128 = vmatpush1.bf16.msra.mxu0 %v3037
    %3129 = vmatprep.subr.bf16.mxu0 0
    %3130 = vmatpush1.bf16.msra.mxu0 %v3036
    %3131 = vmatprep.subr.bf16.mxu0 0
    %3132 = vmatpush1.bf16.msra.mxu0 %v3035
    %3133 = vmatprep.subr.bf16.mxu0 0
    %3134 = vmatpush1.bf16.msra.mxu0 %v3034
    %3135 = vmatprep.subr.bf16.mxu0 0
    %3136 = vmatpush1.bf16.msra.mxu0 %v3033
    %3137 = vmatprep.subr.bf16.mxu0 0
    %3138 = vmatpush2.bf16.msra.mxu0 %v3048
    %3139 = vmatprep.subr.bf16.mxu0 0
    %3140 = vmatpush2.bf16.msra.mxu0 %v3047
    %3141 = vmatprep.subr.bf16.mxu0 0
    %3142 = vmatpush2.bf16.msra.mxu0 %v3046
    %3143 = vmatprep.subr.bf16.mxu0 0
    %3144 = vmatpush2.bf16.msra.mxu0 %v3045
    %3145 = vmatprep.subr.bf16.mxu0 0
    %3146 = vmatpush2.bf16.msra.mxu0 %v3044
    %3147 = vmatprep.subr.bf16.mxu0 0
    %3148 = vmatpush2.bf16.msra.mxu0 %v3043
    %3149 = vmatprep.subr.bf16.mxu0 0
    %3150 = vmatpush2.bf16.msra.mxu0 %v3042
    %3151 = vmatprep.subr.bf16.mxu0 0
    %3152 = vmatpush2.bf16.msra.mxu0 %v3041
    %3153 = vmatprep.mubr.bf16.mxu0 %v2818
    %3154 = vmatmul.mubr.bf16.gmra.mxu0 %v2817
    %v3155 = vpop.f32.mrf.mxu0
    %v3156 = vadd.f32 %v3116, %v3155
    %v3157 = vpop.f32.mrf.mxu0
    %v3158 = vpop.f32.mrf.mxu0
    %v3159 = vpop.f32.mrf.mxu0
    %3160 = vdwg.mxu0
    %3161 = vmax.xlane.f32.xlu0 %v3156
    %v3162 = vpop.xlane.xlu0 %3161
    %v3163 = vsub.f32 %v3156, %v3162
    %v3164 = vmul.f32 %v3163, 1.442695
    %v3165 = vpow.pop %v3164
    %3166 = vadd.xlane.f32.xlu0 %v3165
    %v3167 = vpop.xlane.xlu0 %3166
    %v3168 = vlog2.pop %v3167
    %v3169 = vmul.f32 %v3168, 0.6931472
    %v3170 = vsub.f32 %v3163, %v3169
    %v3171 = vpack.c.bf16 %v3170, %v3170
    %3172 = vst [vmem:[#allocation11] sm:$0xf] %v3171
    // Predicated region
    $region50: #{tpu_custom_call.1} parent=1 // pred_check
      _
    $region51: #{tpu_custom_call.1} parent=1 // pred_check_branch
      %3174 = sbr.rel (0) target = $region53
    $region52: #{tpu_custom_call.1} parent=1 // pred_region
      %s3176 = ssub.s32 64, 64
      %3177 = vsyncadd [#allocation4], %s3176
      %s3179 = sshll.u32 [#allocation11], 4
      %s3180 = int_to_ptr.vmem [resolvable:$true] %s3179
      %3182 = dma.vmem_to_hbm [thread:$0]  %s3180, 64, %s7, [#allocation4]
    $region53: #{tpu_custom_call.1} parent=1 // pred_fallthru
      _
    // Predicated region
    $region54: #{tpu_custom_call.1} parent=1 // pred_check
      _
    $region55: #{tpu_custom_call.1} parent=1 // pred_check_branch
      %3184 = sbr.rel (0) target = $region57
    $region56: #{tpu_custom_call.1} parent=1 // pred_region
      %3185 = dma.done [#allocation4], 64
    $region57: #{tpu_custom_call.1} parent=1 // pred_fallthru
      _
    %3186 = vsyncpa [#allocation3], 1
    %3187 = vsyncpa [#allocation6], 1
    %3188 = vsyncpa [#allocation9], 1
    %3189 = vsyncpa [#allocation4], 1

</llo_original>
